<compile_context>
chip_gen: v6e
topology: v6e:2x2x1
jax: 0.10.0
libtpu: 0.0.40
codegen_flags: <defaults>
</compile_context>

<pallas_src>
import functools

import jax
import jax.numpy as jnp
from jax.experimental import pallas as pl
from jax.experimental.pallas import tpu as pltpu

HP = 128  # padded per-gate width: one full 128-lane vreg per gate


def _sigmoid_tanh(z):
    # sigmoid(z) == 0.5 * (tanh(0.5 * z) + 1) : single EUP transcendental per call.
    return 0.5 * (jnp.tanh(0.5 * z) + 1.0)


def lstm_seq_kernel(x_ref, wih_ref, whh_ref, b_ref, wlin_ref, blin_ref, out_ref,
                    *, seq_len):
    # Hoisted input projection + bias for all timesteps: (T, F) @ (F, 4*HP) -> (T, 4*HP).
    gates_x = (jnp.dot(x_ref[...], wih_ref[...], preferred_element_type=jnp.float32)
               + b_ref[...])

    # h / c carried as values (vregs); padded lanes [H:HP) stay exactly zero.
    h = jnp.zeros((1, HP), jnp.float32)
    c = jnp.zeros((1, HP), jnp.float32)

    # Fully unrolled recurrence (T is static and small) -> LLO scheduler can overlap
    # the h-independent Whh weight push / EUP / VPU work across steps.
    for t in range(seq_len):
        gates = gates_x[t:t + 1, :] + jnp.dot(
            h, whh_ref[...], preferred_element_type=jnp.float32)      # (1, 4*HP)
        # Vreg-aligned gate slices (each gate is one full 128-lane slot).
        i_g = _sigmoid_tanh(gates[:, 0 * HP:1 * HP])
        f_g = _sigmoid_tanh(gates[:, 1 * HP:2 * HP])
        g_g = jnp.tanh(gates[:, 2 * HP:3 * HP])
        o_g = _sigmoid_tanh(gates[:, 3 * HP:4 * HP])
        c = f_g * c + i_g * g_g
        h = o_g * jnp.tanh(c)

    # last_one = lstm_out[:, -1, :] == final hidden state; then Linear + sigmoid.
    logits = (jnp.dot(h, wlin_ref[...], preferred_element_type=jnp.float32)
              + blin_ref[...])                                         # (1, target)
    out_ref[...] = _sigmoid_tanh(logits)


def _pad_gate_lanes(m, hidden_dim):
    """(..., 4*H) -> (..., 4*HP): gate g's H columns placed at the start of lane slot g."""
    lead = m.shape[:-1]
    m4 = m.reshape(*lead, 4, hidden_dim)
    out = jnp.zeros((*lead, 4, HP), jnp.float32).at[..., :hidden_dim].set(m4)
    return out.reshape(*lead, 4 * HP)


def lstm_sequence_forward(x, w_ih, w_hh, b_ih, b_hh, w_lin, b_lin):
    """x: (1, T, F) batch_first.  Returns prob of shape (target_size,) like PyTorch."""
    B, T, F = x.shape
    assert B == 1, "module's init_hidden()/view(-1) imply batch size 1"
    H = w_hh.shape[1]
    assert H <= HP
    target = w_lin.shape[0]

    x2 = x[0].astype(jnp.float32)                                      # (T, F)

    # Transposed + lane-padded weights (one-time prep in the wrapper).
    wih_p = _pad_gate_lanes(w_ih.T.astype(jnp.float32), H)             # (F, 4*HP)
    whh_rows = _pad_gate_lanes(w_hh.T.astype(jnp.float32), H)          # (H, 4*HP)
    whh_p = jnp.zeros((HP, 4 * HP), jnp.float32).at[:H, :].set(whh_rows)   # (HP, 4*HP)
    b_p = _pad_gate_lanes((b_ih + b_hh).astype(jnp.float32).reshape(1, 4 * H), H)  # (1, 4*HP)
    wlin_p = jnp.zeros((HP, target), jnp.float32).at[:H, :].set(
        w_lin.T.astype(jnp.float32))                                   # (HP, target)
    blin = b_lin.reshape(1, target).astype(jnp.float32)

    kernel = functools.partial(lstm_seq_kernel, seq_len=T)
    out = pl.pallas_call(
        kernel,
        out_shape=jax.ShapeDtypeStruct((1, target), jnp.float32),
        in_specs=[pl.BlockSpec(memory_space=pltpu.MemorySpace.VMEM)] * 6,
        out_specs=pl.BlockSpec(memory_space=pltpu.MemorySpace.VMEM),
    )(x2, wih_p, whh_p, b_p, wlin_p, blin)
    return out[0]


def ref_forward(x, w_ih, w_hh, b_ih, b_hh, w_lin, b_lin):
    """Pure-JAX reference matching torch.nn.LSTM semantics (gate order i,f,g,o)."""
    T = x.shape[1]
    H = w_hh.shape[1]
    h = jnp.zeros((1, H), jnp.float32)
    c = jnp.zeros((1, H), jnp.float32)
    for t in range(T):
        g = x[0, t][None, :] @ w_ih.T + h @ w_hh.T + b_ih + b_hh
        i_g = jax.nn.sigmoid(g[:, :H])
        f_g = jax.nn.sigmoid(g[:, H:2 * H])
        g_g = jnp.tanh(g[:, 2 * H:3 * H])
        o_g = jax.nn.sigmoid(g[:, 3 * H:])
        c = f_g * c + i_g * g_g
        h = o_g * jnp.tanh(c)
    logits = h[0] @ w_lin.T + b_lin
    return jax.nn.sigmoid(logits)


if __name__ == "__main__":
    # Small shapes consistent with the module: batch=1 (implied), seq=8,
    # feature_dim=16, hidden_dim=32, target_size=8, layer_cnt=1.
    feature_dim, hidden_dim, target_size, seq_len = 16, 32, 8, 8

    key = jax.random.PRNGKey(0)
    ks = jax.random.split(key, 7)
    k = 1.0 / jnp.sqrt(hidden_dim)  # PyTorch default uniform(-1/sqrt(H), 1/sqrt(H))
    w_ih = jax.random.uniform(ks[0], (4 * hidden_dim, feature_dim), jnp.float32, -k, k)
    w_hh = jax.random.uniform(ks[1], (4 * hidden_dim, hidden_dim), jnp.float32, -k, k)
    b_ih = jax.random.uniform(ks[2], (4 * hidden_dim,), jnp.float32, -k, k)
    b_hh = jax.random.uniform(ks[3], (4 * hidden_dim,), jnp.float32, -k, k)
    w_lin = jax.random.uniform(ks[4], (target_size, hidden_dim), jnp.float32, -k, k)
    b_lin = jax.random.uniform(ks[5], (target_size,), jnp.float32, -k, k)
    x = jax.random.normal(ks[6], (1, seq_len, feature_dim), jnp.float32)

    prob = lstm_sequence_forward(x, w_ih, w_hh, b_ih, b_hh, w_lin, b_lin)
    prob = jax.block_until_ready(prob)

    ref = ref_forward(x, w_ih, w_hh, b_ih, b_hh, w_lin, b_lin)
    assert prob.shape == (target_size,)
    assert jnp.allclose(prob, ref, atol=1e-5, rtol=1e-5), (prob, ref)

    print("KERNEL_OK")
</pallas_src>

<mosaic_0001>
module attributes {stable_mosaic.version = 11 : i64} {
  func.func @lstm_seq_kernel(%arg0: memref<8x16xf32, #tpu.memory_space<vmem>>, %arg1: memref<16x512xf32, #tpu.memory_space<vmem>>, %arg2: memref<128x512xf32, #tpu.memory_space<vmem>>, %arg3: memref<1x512xf32, #tpu.memory_space<vmem>>, %arg4: memref<128x8xf32, #tpu.memory_space<vmem>>, %arg5: memref<1x8xf32, #tpu.memory_space<vmem>>, %arg6: memref<1x8xf32, #tpu.memory_space<vmem>>) attributes {dimension_semantics = [], scalar_prefetch = 0 : i64, scratch_operands = 0 : i64, tpu.core_type = #tpu.core_type<tc>} {
    %c0 = arith.constant 0 : index
    %c0_0 = arith.constant 0 : index
    %0 = vector.load %arg0[%c0, %c0_0] : memref<8x16xf32, #tpu.memory_space<vmem>>, vector<8x16xf32>
    %c0_1 = arith.constant 0 : index
    %c0_2 = arith.constant 0 : index
    %1 = vector.load %arg1[%c0_1, %c0_2] : memref<16x512xf32, #tpu.memory_space<vmem>>, vector<16x512xf32>
    %cst = arith.constant dense<0.000000e+00> : vector<8x512xf32>
    %2 = tpu.matmul %0, %1, %cst {dimension_numbers = #tpu.dot_dimension_numbers<[1], [0], [0], [1], [0, 0, 1, 1], [], []>} : vector<8x16xf32>, vector<16x512xf32>, vector<8x512xf32> -> vector<8x512xf32>
    %c0_3 = arith.constant 0 : index
    %c0_4 = arith.constant 0 : index
    %3 = vector.load %arg3[%c0_3, %c0_4] : memref<1x512xf32, #tpu.memory_space<vmem>>, vector<1x512xf32>
    %4 = vector.broadcast %3 : vector<1x512xf32> to vector<8x512xf32>
    %5 = arith.addf %2, %4 : vector<8x512xf32>
    %cst_5 = arith.constant 0.000000e+00 : f32
    %6 = vector.broadcast %cst_5 : f32 to vector<1x128xf32>
    %cst_6 = arith.constant 0.000000e+00 : f32
    %7 = vector.broadcast %cst_6 : f32 to vector<1x128xf32>
    %8 = vector.extract_strided_slice %5 {offsets = [0, 0], sizes = [1, 512], strides = [1, 1]} : vector<8x512xf32> to vector<1x512xf32>
    %c0_7 = arith.constant 0 : index
    %c0_8 = arith.constant 0 : index
    %9 = vector.load %arg2[%c0_7, %c0_8] : memref<128x512xf32, #tpu.memory_space<vmem>>, vector<128x512xf32>
    %cst_9 = arith.constant dense<0.000000e+00> : vector<1x512xf32>
    %10 = tpu.matmul %6, %9, %cst_9 {dimension_numbers = #tpu.dot_dimension_numbers<[1], [0], [0], [1], [0, 0, 1, 1], [], []>} : vector<1x128xf32>, vector<128x512xf32>, vector<1x512xf32> -> vector<1x512xf32>
    %11 = arith.addf %8, %10 : vector<1x512xf32>
    %12 = vector.extract_strided_slice %11 {offsets = [0, 0], sizes = [1, 128], strides = [1, 1]} : vector<1x512xf32> to vector<1x128xf32>
    %cst_10 = arith.constant 5.000000e-01 : f32
    %13 = vector.broadcast %cst_10 : f32 to vector<1x128xf32>
    %14 = arith.mulf %13, %12 : vector<1x128xf32>
    %15 = math.tanh %14 : vector<1x128xf32>
    %cst_11 = arith.constant 1.000000e+00 : f32
    %16 = vector.broadcast %cst_11 : f32 to vector<1x128xf32>
    %17 = arith.addf %15, %16 : vector<1x128xf32>
    %cst_12 = arith.constant 5.000000e-01 : f32
    %18 = vector.broadcast %cst_12 : f32 to vector<1x128xf32>
    %19 = arith.mulf %18, %17 : vector<1x128xf32>
    %20 = vector.extract_strided_slice %11 {offsets = [0, 128], sizes = [1, 128], strides = [1, 1]} : vector<1x512xf32> to vector<1x128xf32>
    %cst_13 = arith.constant 5.000000e-01 : f32
    %21 = vector.broadcast %cst_13 : f32 to vector<1x128xf32>
    %22 = arith.mulf %21, %20 : vector<1x128xf32>
    %23 = math.tanh %22 : vector<1x128xf32>
    %cst_14 = arith.constant 1.000000e+00 : f32
    %24 = vector.broadcast %cst_14 : f32 to vector<1x128xf32>
    %25 = arith.addf %23, %24 : vector<1x128xf32>
    %cst_15 = arith.constant 5.000000e-01 : f32
    %26 = vector.broadcast %cst_15 : f32 to vector<1x128xf32>
    %27 = arith.mulf %26, %25 : vector<1x128xf32>
    %28 = vector.extract_strided_slice %11 {offsets = [0, 256], sizes = [1, 128], strides = [1, 1]} : vector<1x512xf32> to vector<1x128xf32>
    %29 = math.tanh %28 : vector<1x128xf32>
    %30 = vector.extract_strided_slice %11 {offsets = [0, 384], sizes = [1, 128], strides = [1, 1]} : vector<1x512xf32> to vector<1x128xf32>
    %cst_16 = arith.constant 5.000000e-01 : f32
    %31 = vector.broadcast %cst_16 : f32 to vector<1x128xf32>
    %32 = arith.mulf %31, %30 : vector<1x128xf32>
    %33 = math.tanh %32 : vector<1x128xf32>
    %cst_17 = arith.constant 1.000000e+00 : f32
    %34 = vector.broadcast %cst_17 : f32 to vector<1x128xf32>
    %35 = arith.addf %33, %34 : vector<1x128xf32>
    %cst_18 = arith.constant 5.000000e-01 : f32
    %36 = vector.broadcast %cst_18 : f32 to vector<1x128xf32>
    %37 = arith.mulf %36, %35 : vector<1x128xf32>
    %38 = arith.mulf %27, %7 : vector<1x128xf32>
    %39 = arith.mulf %19, %29 : vector<1x128xf32>
    %40 = arith.addf %38, %39 : vector<1x128xf32>
    %41 = math.tanh %40 : vector<1x128xf32>
    %42 = arith.mulf %37, %41 : vector<1x128xf32>
    %43 = vector.extract_strided_slice %5 {offsets = [1, 0], sizes = [1, 512], strides = [1, 1]} : vector<8x512xf32> to vector<1x512xf32>
    %c0_19 = arith.constant 0 : index
    %c0_20 = arith.constant 0 : index
    %44 = vector.load %arg2[%c0_19, %c0_20] : memref<128x512xf32, #tpu.memory_space<vmem>>, vector<128x512xf32>
    %cst_21 = arith.constant dense<0.000000e+00> : vector<1x512xf32>
    %45 = tpu.matmul %42, %44, %cst_21 {dimension_numbers = #tpu.dot_dimension_numbers<[1], [0], [0], [1], [0, 0, 1, 1], [], []>} : vector<1x128xf32>, vector<128x512xf32>, vector<1x512xf32> -> vector<1x512xf32>
    %46 = arith.addf %43, %45 : vector<1x512xf32>
    %47 = vector.extract_strided_slice %46 {offsets = [0, 0], sizes = [1, 128], strides = [1, 1]} : vector<1x512xf32> to vector<1x128xf32>
    %cst_22 = arith.constant 5.000000e-01 : f32
    %48 = vector.broadcast %cst_22 : f32 to vector<1x128xf32>
    %49 = arith.mulf %48, %47 : vector<1x128xf32>
    %50 = math.tanh %49 : vector<1x128xf32>
    %cst_23 = arith.constant 1.000000e+00 : f32
    %51 = vector.broadcast %cst_23 : f32 to vector<1x128xf32>
    %52 = arith.addf %50, %51 : vector<1x128xf32>
    %cst_24 = arith.constant 5.000000e-01 : f32
    %53 = vector.broadcast %cst_24 : f32 to vector<1x128xf32>
    %54 = arith.mulf %53, %52 : vector<1x128xf32>
    %55 = vector.extract_strided_slice %46 {offsets = [0, 128], sizes = [1, 128], strides = [1, 1]} : vector<1x512xf32> to vector<1x128xf32>
    %cst_25 = arith.constant 5.000000e-01 : f32
    %56 = vector.broadcast %cst_25 : f32 to vector<1x128xf32>
    %57 = arith.mulf %56, %55 : vector<1x128xf32>
    %58 = math.tanh %57 : vector<1x128xf32>
    %cst_26 = arith.constant 1.000000e+00 : f32
    %59 = vector.broadcast %cst_26 : f32 to vector<1x128xf32>
    %60 = arith.addf %58, %59 : vector<1x128xf32>
    %cst_27 = arith.constant 5.000000e-01 : f32
    %61 = vector.broadcast %cst_27 : f32 to vector<1x128xf32>
    %62 = arith.mulf %61, %60 : vector<1x128xf32>
    %63 = vector.extract_strided_slice %46 {offsets = [0, 256], sizes = [1, 128], strides = [1, 1]} : vector<1x512xf32> to vector<1x128xf32>
    %64 = math.tanh %63 : vector<1x128xf32>
    %65 = vector.extract_strided_slice %46 {offsets = [0, 384], sizes = [1, 128], strides = [1, 1]} : vector<1x512xf32> to vector<1x128xf32>
    %cst_28 = arith.constant 5.000000e-01 : f32
    %66 = vector.broadcast %cst_28 : f32 to vector<1x128xf32>
    %67 = arith.mulf %66, %65 : vector<1x128xf32>
    %68 = math.tanh %67 : vector<1x128xf32>
    %cst_29 = arith.constant 1.000000e+00 : f32
    %69 = vector.broadcast %cst_29 : f32 to vector<1x128xf32>
    %70 = arith.addf %68, %69 : vector<1x128xf32>
    %cst_30 = arith.constant 5.000000e-01 : f32
    %71 = vector.broadcast %cst_30 : f32 to vector<1x128xf32>
    %72 = arith.mulf %71, %70 : vector<1x128xf32>
    %73 = arith.mulf %62, %40 : vector<1x128xf32>
    %74 = arith.mulf %54, %64 : vector<1x128xf32>
    %75 = arith.addf %73, %74 : vector<1x128xf32>
    %76 = math.tanh %75 : vector<1x128xf32>
    %77 = arith.mulf %72, %76 : vector<1x128xf32>
    %78 = vector.extract_strided_slice %5 {offsets = [2, 0], sizes = [1, 512], strides = [1, 1]} : vector<8x512xf32> to vector<1x512xf32>
    %c0_31 = arith.constant 0 : index
    %c0_32 = arith.constant 0 : index
    %79 = vector.load %arg2[%c0_31, %c0_32] : memref<128x512xf32, #tpu.memory_space<vmem>>, vector<128x512xf32>
    %cst_33 = arith.constant dense<0.000000e+00> : vector<1x512xf32>
    %80 = tpu.matmul %77, %79, %cst_33 {dimension_numbers = #tpu.dot_dimension_numbers<[1], [0], [0], [1], [0, 0, 1, 1], [], []>} : vector<1x128xf32>, vector<128x512xf32>, vector<1x512xf32> -> vector<1x512xf32>
    %81 = arith.addf %78, %80 : vector<1x512xf32>
    %82 = vector.extract_strided_slice %81 {offsets = [0, 0], sizes = [1, 128], strides = [1, 1]} : vector<1x512xf32> to vector<1x128xf32>
    %cst_34 = arith.constant 5.000000e-01 : f32
    %83 = vector.broadcast %cst_34 : f32 to vector<1x128xf32>
    %84 = arith.mulf %83, %82 : vector<1x128xf32>
    %85 = math.tanh %84 : vector<1x128xf32>
    %cst_35 = arith.constant 1.000000e+00 : f32
    %86 = vector.broadcast %cst_35 : f32 to vector<1x128xf32>
    %87 = arith.addf %85, %86 : vector<1x128xf32>
    %cst_36 = arith.constant 5.000000e-01 : f32
    %88 = vector.broadcast %cst_36 : f32 to vector<1x128xf32>
    %89 = arith.mulf %88, %87 : vector<1x128xf32>
    %90 = vector.extract_strided_slice %81 {offsets = [0, 128], sizes = [1, 128], strides = [1, 1]} : vector<1x512xf32> to vector<1x128xf32>
    %cst_37 = arith.constant 5.000000e-01 : f32
    %91 = vector.broadcast %cst_37 : f32 to vector<1x128xf32>
    %92 = arith.mulf %91, %90 : vector<1x128xf32>
    %93 = math.tanh %92 : vector<1x128xf32>
    %cst_38 = arith.constant 1.000000e+00 : f32
    %94 = vector.broadcast %cst_38 : f32 to vector<1x128xf32>
    %95 = arith.addf %93, %94 : vector<1x128xf32>
    %cst_39 = arith.constant 5.000000e-01 : f32
    %96 = vector.broadcast %cst_39 : f32 to vector<1x128xf32>
    %97 = arith.mulf %96, %95 : vector<1x128xf32>
    %98 = vector.extract_strided_slice %81 {offsets = [0, 256], sizes = [1, 128], strides = [1, 1]} : vector<1x512xf32> to vector<1x128xf32>
    %99 = math.tanh %98 : vector<1x128xf32>
    %100 = vector.extract_strided_slice %81 {offsets = [0, 384], sizes = [1, 128], strides = [1, 1]} : vector<1x512xf32> to vector<1x128xf32>
    %cst_40 = arith.constant 5.000000e-01 : f32
    %101 = vector.broadcast %cst_40 : f32 to vector<1x128xf32>
    %102 = arith.mulf %101, %100 : vector<1x128xf32>
    %103 = math.tanh %102 : vector<1x128xf32>
    %cst_41 = arith.constant 1.000000e+00 : f32
    %104 = vector.broadcast %cst_41 : f32 to vector<1x128xf32>
    %105 = arith.addf %103, %104 : vector<1x128xf32>
    %cst_42 = arith.constant 5.000000e-01 : f32
    %106 = vector.broadcast %cst_42 : f32 to vector<1x128xf32>
    %107 = arith.mulf %106, %105 : vector<1x128xf32>
    %108 = arith.mulf %97, %75 : vector<1x128xf32>
    %109 = arith.mulf %89, %99 : vector<1x128xf32>
    %110 = arith.addf %108, %109 : vector<1x128xf32>
    %111 = math.tanh %110 : vector<1x128xf32>
    %112 = arith.mulf %107, %111 : vector<1x128xf32>
    %113 = vector.extract_strided_slice %5 {offsets = [3, 0], sizes = [1, 512], strides = [1, 1]} : vector<8x512xf32> to vector<1x512xf32>
    %c0_43 = arith.constant 0 : index
    %c0_44 = arith.constant 0 : index
    %114 = vector.load %arg2[%c0_43, %c0_44] : memref<128x512xf32, #tpu.memory_space<vmem>>, vector<128x512xf32>
    %cst_45 = arith.constant dense<0.000000e+00> : vector<1x512xf32>
    %115 = tpu.matmul %112, %114, %cst_45 {dimension_numbers = #tpu.dot_dimension_numbers<[1], [0], [0], [1], [0, 0, 1, 1], [], []>} : vector<1x128xf32>, vector<128x512xf32>, vector<1x512xf32> -> vector<1x512xf32>
    %116 = arith.addf %113, %115 : vector<1x512xf32>
    %117 = vector.extract_strided_slice %116 {offsets = [0, 0], sizes = [1, 128], strides = [1, 1]} : vector<1x512xf32> to vector<1x128xf32>
    %cst_46 = arith.constant 5.000000e-01 : f32
    %118 = vector.broadcast %cst_46 : f32 to vector<1x128xf32>
    %119 = arith.mulf %118, %117 : vector<1x128xf32>
    %120 = math.tanh %119 : vector<1x128xf32>
    %cst_47 = arith.constant 1.000000e+00 : f32
    %121 = vector.broadcast %cst_47 : f32 to vector<1x128xf32>
    %122 = arith.addf %120, %121 : vector<1x128xf32>
    %cst_48 = arith.constant 5.000000e-01 : f32
    %123 = vector.broadcast %cst_48 : f32 to vector<1x128xf32>
    %124 = arith.mulf %123, %122 : vector<1x128xf32>
    %125 = vector.extract_strided_slice %116 {offsets = [0, 128], sizes = [1, 128], strides = [1, 1]} : vector<1x512xf32> to vector<1x128xf32>
    %cst_49 = arith.constant 5.000000e-01 : f32
    %126 = vector.broadcast %cst_49 : f32 to vector<1x128xf32>
    %127 = arith.mulf %126, %125 : vector<1x128xf32>
    %128 = math.tanh %127 : vector<1x128xf32>
    %cst_50 = arith.constant 1.000000e+00 : f32
    %129 = vector.broadcast %cst_50 : f32 to vector<1x128xf32>
    %130 = arith.addf %128, %129 : vector<1x128xf32>
    %cst_51 = arith.constant 5.000000e-01 : f32
    %131 = vector.broadcast %cst_51 : f32 to vector<1x128xf32>
    %132 = arith.mulf %131, %130 : vector<1x128xf32>
    %133 = vector.extract_strided_slice %116 {offsets = [0, 256], sizes = [1, 128], strides = [1, 1]} : vector<1x512xf32> to vector<1x128xf32>
    %134 = math.tanh %133 : vector<1x128xf32>
    %135 = vector.extract_strided_slice %116 {offsets = [0, 384], sizes = [1, 128], strides = [1, 1]} : vector<1x512xf32> to vector<1x128xf32>
    %cst_52 = arith.constant 5.000000e-01 : f32
    %136 = vector.broadcast %cst_52 : f32 to vector<1x128xf32>
    %137 = arith.mulf %136, %135 : vector<1x128xf32>
    %138 = math.tanh %137 : vector<1x128xf32>
    %cst_53 = arith.constant 1.000000e+00 : f32
    %139 = vector.broadcast %cst_53 : f32 to vector<1x128xf32>
    %140 = arith.addf %138, %139 : vector<1x128xf32>
    %cst_54 = arith.constant 5.000000e-01 : f32
    %141 = vector.broadcast %cst_54 : f32 to vector<1x128xf32>
    %142 = arith.mulf %141, %140 : vector<1x128xf32>
    %143 = arith.mulf %132, %110 : vector<1x128xf32>
    %144 = arith.mulf %124, %134 : vector<1x128xf32>
    %145 = arith.addf %143, %144 : vector<1x128xf32>
    %146 = math.tanh %145 : vector<1x128xf32>
    %147 = arith.mulf %142, %146 : vector<1x128xf32>
    %148 = vector.extract_strided_slice %5 {offsets = [4, 0], sizes = [1, 512], strides = [1, 1]} : vector<8x512xf32> to vector<1x512xf32>
    %c0_55 = arith.constant 0 : index
    %c0_56 = arith.constant 0 : index
    %149 = vector.load %arg2[%c0_55, %c0_56] : memref<128x512xf32, #tpu.memory_space<vmem>>, vector<128x512xf32>
    %cst_57 = arith.constant dense<0.000000e+00> : vector<1x512xf32>
    %150 = tpu.matmul %147, %149, %cst_57 {dimension_numbers = #tpu.dot_dimension_numbers<[1], [0], [0], [1], [0, 0, 1, 1], [], []>} : vector<1x128xf32>, vector<128x512xf32>, vector<1x512xf32> -> vector<1x512xf32>
    %151 = arith.addf %148, %150 : vector<1x512xf32>
    %152 = vector.extract_strided_slice %151 {offsets = [0, 0], sizes = [1, 128], strides = [1, 1]} : vector<1x512xf32> to vector<1x128xf32>
    %cst_58 = arith.constant 5.000000e-01 : f32
    %153 = vector.broadcast %cst_58 : f32 to vector<1x128xf32>
    %154 = arith.mulf %153, %152 : vector<1x128xf32>
    %155 = math.tanh %154 : vector<1x128xf32>
    %cst_59 = arith.constant 1.000000e+00 : f32
    %156 = vector.broadcast %cst_59 : f32 to vector<1x128xf32>
    %157 = arith.addf %155, %156 : vector<1x128xf32>
    %cst_60 = arith.constant 5.000000e-01 : f32
    %158 = vector.broadcast %cst_60 : f32 to vector<1x128xf32>
    %159 = arith.mulf %158, %157 : vector<1x128xf32>
    %160 = vector.extract_strided_slice %151 {offsets = [0, 128], sizes = [1, 128], strides = [1, 1]} : vector<1x512xf32> to vector<1x128xf32>
    %cst_61 = arith.constant 5.000000e-01 : f32
    %161 = vector.broadcast %cst_61 : f32 to vector<1x128xf32>
    %162 = arith.mulf %161, %160 : vector<1x128xf32>
    %163 = math.tanh %162 : vector<1x128xf32>
    %cst_62 = arith.constant 1.000000e+00 : f32
    %164 = vector.broadcast %cst_62 : f32 to vector<1x128xf32>
    %165 = arith.addf %163, %164 : vector<1x128xf32>
    %cst_63 = arith.constant 5.000000e-01 : f32
    %166 = vector.broadcast %cst_63 : f32 to vector<1x128xf32>
    %167 = arith.mulf %166, %165 : vector<1x128xf32>
    %168 = vector.extract_strided_slice %151 {offsets = [0, 256], sizes = [1, 128], strides = [1, 1]} : vector<1x512xf32> to vector<1x128xf32>
    %169 = math.tanh %168 : vector<1x128xf32>
    %170 = vector.extract_strided_slice %151 {offsets = [0, 384], sizes = [1, 128], strides = [1, 1]} : vector<1x512xf32> to vector<1x128xf32>
    %cst_64 = arith.constant 5.000000e-01 : f32
    %171 = vector.broadcast %cst_64 : f32 to vector<1x128xf32>
    %172 = arith.mulf %171, %170 : vector<1x128xf32>
    %173 = math.tanh %172 : vector<1x128xf32>
    %cst_65 = arith.constant 1.000000e+00 : f32
    %174 = vector.broadcast %cst_65 : f32 to vector<1x128xf32>
    %175 = arith.addf %173, %174 : vector<1x128xf32>
    %cst_66 = arith.constant 5.000000e-01 : f32
    %176 = vector.broadcast %cst_66 : f32 to vector<1x128xf32>
    %177 = arith.mulf %176, %175 : vector<1x128xf32>
    %178 = arith.mulf %167, %145 : vector<1x128xf32>
    %179 = arith.mulf %159, %169 : vector<1x128xf32>
    %180 = arith.addf %178, %179 : vector<1x128xf32>
    %181 = math.tanh %180 : vector<1x128xf32>
    %182 = arith.mulf %177, %181 : vector<1x128xf32>
    %183 = vector.extract_strided_slice %5 {offsets = [5, 0], sizes = [1, 512], strides = [1, 1]} : vector<8x512xf32> to vector<1x512xf32>
    %c0_67 = arith.constant 0 : index
    %c0_68 = arith.constant 0 : index
    %184 = vector.load %arg2[%c0_67, %c0_68] : memref<128x512xf32, #tpu.memory_space<vmem>>, vector<128x512xf32>
    %cst_69 = arith.constant dense<0.000000e+00> : vector<1x512xf32>
    %185 = tpu.matmul %182, %184, %cst_69 {dimension_numbers = #tpu.dot_dimension_numbers<[1], [0], [0], [1], [0, 0, 1, 1], [], []>} : vector<1x128xf32>, vector<128x512xf32>, vector<1x512xf32> -> vector<1x512xf32>
    %186 = arith.addf %183, %185 : vector<1x512xf32>
    %187 = vector.extract_strided_slice %186 {offsets = [0, 0], sizes = [1, 128], strides = [1, 1]} : vector<1x512xf32> to vector<1x128xf32>
    %cst_70 = arith.constant 5.000000e-01 : f32
    %188 = vector.broadcast %cst_70 : f32 to vector<1x128xf32>
    %189 = arith.mulf %188, %187 : vector<1x128xf32>
    %190 = math.tanh %189 : vector<1x128xf32>
    %cst_71 = arith.constant 1.000000e+00 : f32
    %191 = vector.broadcast %cst_71 : f32 to vector<1x128xf32>
    %192 = arith.addf %190, %191 : vector<1x128xf32>
    %cst_72 = arith.constant 5.000000e-01 : f32
    %193 = vector.broadcast %cst_72 : f32 to vector<1x128xf32>
    %194 = arith.mulf %193, %192 : vector<1x128xf32>
    %195 = vector.extract_strided_slice %186 {offsets = [0, 128], sizes = [1, 128], strides = [1, 1]} : vector<1x512xf32> to vector<1x128xf32>
    %cst_73 = arith.constant 5.000000e-01 : f32
    %196 = vector.broadcast %cst_73 : f32 to vector<1x128xf32>
    %197 = arith.mulf %196, %195 : vector<1x128xf32>
    %198 = math.tanh %197 : vector<1x128xf32>
    %cst_74 = arith.constant 1.000000e+00 : f32
    %199 = vector.broadcast %cst_74 : f32 to vector<1x128xf32>
    %200 = arith.addf %198, %199 : vector<1x128xf32>
    %cst_75 = arith.constant 5.000000e-01 : f32
    %201 = vector.broadcast %cst_75 : f32 to vector<1x128xf32>
    %202 = arith.mulf %201, %200 : vector<1x128xf32>
    %203 = vector.extract_strided_slice %186 {offsets = [0, 256], sizes = [1, 128], strides = [1, 1]} : vector<1x512xf32> to vector<1x128xf32>
    %204 = math.tanh %203 : vector<1x128xf32>
    %205 = vector.extract_strided_slice %186 {offsets = [0, 384], sizes = [1, 128], strides = [1, 1]} : vector<1x512xf32> to vector<1x128xf32>
    %cst_76 = arith.constant 5.000000e-01 : f32
    %206 = vector.broadcast %cst_76 : f32 to vector<1x128xf32>
    %207 = arith.mulf %206, %205 : vector<1x128xf32>
    %208 = math.tanh %207 : vector<1x128xf32>
    %cst_77 = arith.constant 1.000000e+00 : f32
    %209 = vector.broadcast %cst_77 : f32 to vector<1x128xf32>
    %210 = arith.addf %208, %209 : vector<1x128xf32>
    %cst_78 = arith.constant 5.000000e-01 : f32
    %211 = vector.broadcast %cst_78 : f32 to vector<1x128xf32>
    %212 = arith.mulf %211, %210 : vector<1x128xf32>
    %213 = arith.mulf %202, %180 : vector<1x128xf32>
    %214 = arith.mulf %194, %204 : vector<1x128xf32>
    %215 = arith.addf %213, %214 : vector<1x128xf32>
    %216 = math.tanh %215 : vector<1x128xf32>
    %217 = arith.mulf %212, %216 : vector<1x128xf32>
    %218 = vector.extract_strided_slice %5 {offsets = [6, 0], sizes = [1, 512], strides = [1, 1]} : vector<8x512xf32> to vector<1x512xf32>
    %c0_79 = arith.constant 0 : index
    %c0_80 = arith.constant 0 : index
    %219 = vector.load %arg2[%c0_79, %c0_80] : memref<128x512xf32, #tpu.memory_space<vmem>>, vector<128x512xf32>
    %cst_81 = arith.constant dense<0.000000e+00> : vector<1x512xf32>
    %220 = tpu.matmul %217, %219, %cst_81 {dimension_numbers = #tpu.dot_dimension_numbers<[1], [0], [0], [1], [0, 0, 1, 1], [], []>} : vector<1x128xf32>, vector<128x512xf32>, vector<1x512xf32> -> vector<1x512xf32>
    %221 = arith.addf %218, %220 : vector<1x512xf32>
    %222 = vector.extract_strided_slice %221 {offsets = [0, 0], sizes = [1, 128], strides = [1, 1]} : vector<1x512xf32> to vector<1x128xf32>
    %cst_82 = arith.constant 5.000000e-01 : f32
    %223 = vector.broadcast %cst_82 : f32 to vector<1x128xf32>
    %224 = arith.mulf %223, %222 : vector<1x128xf32>
    %225 = math.tanh %224 : vector<1x128xf32>
    %cst_83 = arith.constant 1.000000e+00 : f32
    %226 = vector.broadcast %cst_83 : f32 to vector<1x128xf32>
    %227 = arith.addf %225, %226 : vector<1x128xf32>
    %cst_84 = arith.constant 5.000000e-01 : f32
    %228 = vector.broadcast %cst_84 : f32 to vector<1x128xf32>
    %229 = arith.mulf %228, %227 : vector<1x128xf32>
    %230 = vector.extract_strided_slice %221 {offsets = [0, 128], sizes = [1, 128], strides = [1, 1]} : vector<1x512xf32> to vector<1x128xf32>
    %cst_85 = arith.constant 5.000000e-01 : f32
    %231 = vector.broadcast %cst_85 : f32 to vector<1x128xf32>
    %232 = arith.mulf %231, %230 : vector<1x128xf32>
    %233 = math.tanh %232 : vector<1x128xf32>
    %cst_86 = arith.constant 1.000000e+00 : f32
    %234 = vector.broadcast %cst_86 : f32 to vector<1x128xf32>
    %235 = arith.addf %233, %234 : vector<1x128xf32>
    %cst_87 = arith.constant 5.000000e-01 : f32
    %236 = vector.broadcast %cst_87 : f32 to vector<1x128xf32>
    %237 = arith.mulf %236, %235 : vector<1x128xf32>
    %238 = vector.extract_strided_slice %221 {offsets = [0, 256], sizes = [1, 128], strides = [1, 1]} : vector<1x512xf32> to vector<1x128xf32>
    %239 = math.tanh %238 : vector<1x128xf32>
    %240 = vector.extract_strided_slice %221 {offsets = [0, 384], sizes = [1, 128], strides = [1, 1]} : vector<1x512xf32> to vector<1x128xf32>
    %cst_88 = arith.constant 5.000000e-01 : f32
    %241 = vector.broadcast %cst_88 : f32 to vector<1x128xf32>
    %242 = arith.mulf %241, %240 : vector<1x128xf32>
    %243 = math.tanh %242 : vector<1x128xf32>
    %cst_89 = arith.constant 1.000000e+00 : f32
    %244 = vector.broadcast %cst_89 : f32 to vector<1x128xf32>
    %245 = arith.addf %243, %244 : vector<1x128xf32>
    %cst_90 = arith.constant 5.000000e-01 : f32
    %246 = vector.broadcast %cst_90 : f32 to vector<1x128xf32>
    %247 = arith.mulf %246, %245 : vector<1x128xf32>
    %248 = arith.mulf %237, %215 : vector<1x128xf32>
    %249 = arith.mulf %229, %239 : vector<1x128xf32>
    %250 = arith.addf %248, %249 : vector<1x128xf32>
    %251 = math.tanh %250 : vector<1x128xf32>
    %252 = arith.mulf %247, %251 : vector<1x128xf32>
    %253 = vector.extract_strided_slice %5 {offsets = [7, 0], sizes = [1, 512], strides = [1, 1]} : vector<8x512xf32> to vector<1x512xf32>
    %c0_91 = arith.constant 0 : index
    %c0_92 = arith.constant 0 : index
    %254 = vector.load %arg2[%c0_91, %c0_92] : memref<128x512xf32, #tpu.memory_space<vmem>>, vector<128x512xf32>
    %cst_93 = arith.constant dense<0.000000e+00> : vector<1x512xf32>
    %255 = tpu.matmul %252, %254, %cst_93 {dimension_numbers = #tpu.dot_dimension_numbers<[1], [0], [0], [1], [0, 0, 1, 1], [], []>} : vector<1x128xf32>, vector<128x512xf32>, vector<1x512xf32> -> vector<1x512xf32>
    %256 = arith.addf %253, %255 : vector<1x512xf32>
    %257 = vector.extract_strided_slice %256 {offsets = [0, 0], sizes = [1, 128], strides = [1, 1]} : vector<1x512xf32> to vector<1x128xf32>
    %cst_94 = arith.constant 5.000000e-01 : f32
    %258 = vector.broadcast %cst_94 : f32 to vector<1x128xf32>
    %259 = arith.mulf %258, %257 : vector<1x128xf32>
    %260 = math.tanh %259 : vector<1x128xf32>
    %cst_95 = arith.constant 1.000000e+00 : f32
    %261 = vector.broadcast %cst_95 : f32 to vector<1x128xf32>
    %262 = arith.addf %260, %261 : vector<1x128xf32>
    %cst_96 = arith.constant 5.000000e-01 : f32
    %263 = vector.broadcast %cst_96 : f32 to vector<1x128xf32>
    %264 = arith.mulf %263, %262 : vector<1x128xf32>
    %265 = vector.extract_strided_slice %256 {offsets = [0, 128], sizes = [1, 128], strides = [1, 1]} : vector<1x512xf32> to vector<1x128xf32>
    %cst_97 = arith.constant 5.000000e-01 : f32
    %266 = vector.broadcast %cst_97 : f32 to vector<1x128xf32>
    %267 = arith.mulf %266, %265 : vector<1x128xf32>
    %268 = math.tanh %267 : vector<1x128xf32>
    %cst_98 = arith.constant 1.000000e+00 : f32
    %269 = vector.broadcast %cst_98 : f32 to vector<1x128xf32>
    %270 = arith.addf %268, %269 : vector<1x128xf32>
    %cst_99 = arith.constant 5.000000e-01 : f32
    %271 = vector.broadcast %cst_99 : f32 to vector<1x128xf32>
    %272 = arith.mulf %271, %270 : vector<1x128xf32>
    %273 = vector.extract_strided_slice %256 {offsets = [0, 256], sizes = [1, 128], strides = [1, 1]} : vector<1x512xf32> to vector<1x128xf32>
    %274 = math.tanh %273 : vector<1x128xf32>
    %275 = vector.extract_strided_slice %256 {offsets = [0, 384], sizes = [1, 128], strides = [1, 1]} : vector<1x512xf32> to vector<1x128xf32>
    %cst_100 = arith.constant 5.000000e-01 : f32
    %276 = vector.broadcast %cst_100 : f32 to vector<1x128xf32>
    %277 = arith.mulf %276, %275 : vector<1x128xf32>
    %278 = math.tanh %277 : vector<1x128xf32>
    %cst_101 = arith.constant 1.000000e+00 : f32
    %279 = vector.broadcast %cst_101 : f32 to vector<1x128xf32>
    %280 = arith.addf %278, %279 : vector<1x128xf32>
    %cst_102 = arith.constant 5.000000e-01 : f32
    %281 = vector.broadcast %cst_102 : f32 to vector<1x128xf32>
    %282 = arith.mulf %281, %280 : vector<1x128xf32>
    %283 = arith.mulf %272, %250 : vector<1x128xf32>
    %284 = arith.mulf %264, %274 : vector<1x128xf32>
    %285 = arith.addf %283, %284 : vector<1x128xf32>
    %286 = math.tanh %285 : vector<1x128xf32>
    %287 = arith.mulf %282, %286 : vector<1x128xf32>
    %c0_103 = arith.constant 0 : index
    %c0_104 = arith.constant 0 : index
    %288 = vector.load %arg4[%c0_103, %c0_104] : memref<128x8xf32, #tpu.memory_space<vmem>>, vector<128x8xf32>
    %cst_105 = arith.constant dense<0.000000e+00> : vector<1x8xf32>
    %289 = tpu.matmul %287, %288, %cst_105 {dimension_numbers = #tpu.dot_dimension_numbers<[1], [0], [0], [1], [0, 0, 1, 1], [], []>} : vector<1x128xf32>, vector<128x8xf32>, vector<1x8xf32> -> vector<1x8xf32>
    %c0_106 = arith.constant 0 : index
    %c0_107 = arith.constant 0 : index
    %290 = vector.load %arg5[%c0_106, %c0_107] : memref<1x8xf32, #tpu.memory_space<vmem>>, vector<1x8xf32>
    %291 = arith.addf %289, %290 : vector<1x8xf32>
    %cst_108 = arith.constant 5.000000e-01 : f32
    %292 = vector.broadcast %cst_108 : f32 to vector<1x8xf32>
    %293 = arith.mulf %292, %291 : vector<1x8xf32>
    %294 = math.tanh %293 : vector<1x8xf32>
    %cst_109 = arith.constant 1.000000e+00 : f32
    %295 = vector.broadcast %cst_109 : f32 to vector<1x8xf32>
    %296 = arith.addf %294, %295 : vector<1x8xf32>
    %cst_110 = arith.constant 5.000000e-01 : f32
    %297 = vector.broadcast %cst_110 : f32 to vector<1x8xf32>
    %298 = arith.mulf %297, %296 : vector<1x8xf32>
    %c0_111 = arith.constant 0 : index
    %c0_112 = arith.constant 0 : index
    %299 = vector.load %arg6[%c0_111, %c0_112] : memref<1x8xf32, #tpu.memory_space<vmem>>, vector<1x8xf32>
    tpu.vector_store %arg6[%c0_111, %c0_112], %298 {strides = array<i32>} : memref<1x8xf32, #tpu.memory_space<vmem>>, vector<1x8xf32>,
    return
  }
}

</mosaic_0001>

<llo_original>
// kernel: tpu_custom_call.1
$region0: #{tpu_custom_call.1}
  #allocation0 [shape = 'u32[]', space=smem, size = 0x4, offset = 0x4, fixed_abs, tag = 'smem constant byte address 0x4 - core index']
  #allocation1 [shape = 'u32[144,128]{1,0:T(1,128)}', space=vmem, size = 0x12000, scoped, tag = 'internal scratch']
  %s0 = inlined_call_operand.vmem [shape: f32[8,16], index: 0, kind: input, shape index: {}]
  %s1 = inlined_call_operand.vmem [shape: f32[16,512], index: 1, kind: input, shape index: {}]
  %s2 = inlined_call_operand.hbm [shape: f32[128,512], index: 2, kind: input, shape index: {}]
  %s3 = inlined_call_operand.vmem [shape: f32[1,512], index: 3, kind: input, shape index: {}]
  %s4 = inlined_call_operand.vmem [shape: f32[128,8], index: 4, kind: input, shape index: {}]
  %s5 = inlined_call_operand.vmem [shape: f32[1,8], index: 5, kind: input, shape index: {}]
  %s6 = inlined_call_operand.hbm [shape: f32[1,8], index: 6, kind: output, shape index: {}]
  %s7 = sld [smem:[#allocation0]]
  $region38: #{tpu_custom_call.1} parent=0
    _
  %s9 = ssub.s32 1, %s7
  %s10 = scalar_select 0, %s9, %s7
  $region1: #{tpu_custom_call.1} parent=0
    #allocation2 [shape = 'u8[262144]{0}', space=vmem, size = 0x40000, scoped, tag = 'input window, operand 2, single buffered']
    #allocation3 [shape = 's32[1]{0}', space=sflag, size = 0x4, scoped, tag = 'scoped memory for tpu_custom_call.1']
    #allocation4 [shape = 's32[1]{0}', space=sflag, size = 0x4, scoped, tag = 'scoped memory for tpu_custom_call.1']
    #allocation5 [shape = 'u8[512]{0}', space=vmem, size = 0x400, scoped, tag = 'output window, operand 0, single buffered']
    %11 = vsyncpa [#allocation3], 0
    %12 = vsyncpa [#allocation4], 0
    // Predicated region
    $region2: #{tpu_custom_call.1} parent=1 // pred_check
      _
    $region3: #{tpu_custom_call.1} parent=1 // pred_check_branch
      %14 = sbr.rel (0) target = $region5
    $region4: #{tpu_custom_call.1} parent=1 // pred_region
      _
    $region5: #{tpu_custom_call.1} parent=1 // pred_fallthru
      _
    // Predicated region
    $region6: #{tpu_custom_call.1} parent=1 // pred_check
      _
    $region7: #{tpu_custom_call.1} parent=1 // pred_check_branch
      %16 = sbr.rel (0) target = $region9
    $region8: #{tpu_custom_call.1} parent=1 // pred_region
      _
    $region9: #{tpu_custom_call.1} parent=1 // pred_fallthru
      _
    // Predicated region
    $region10: #{tpu_custom_call.1} parent=1 // pred_check
      _
    $region11: #{tpu_custom_call.1} parent=1 // pred_check_branch
      %18 = sbr.rel (0) target = $region13
    $region12: #{tpu_custom_call.1} parent=1 // pred_region
      %s20 = ssub.s32 8192, 8192
      %21 = vsyncadd [#allocation3], %s20
      %s22 = sshll.u32 [#allocation2], 4
      %s23 = int_to_ptr.vmem [resolvable:$true] %s22
      %28 = dma.hbm_to_vmem [thread:$0]  %s2, 8192, %s23, [#allocation3], 512, 512, 32
    $region13: #{tpu_custom_call.1} parent=1 // pred_fallthru
      _
    // Predicated region
    $region14: #{tpu_custom_call.1} parent=1 // pred_check
      _
    $region15: #{tpu_custom_call.1} parent=1 // pred_check_branch
      %30 = sbr.rel (0) target = $region17
    $region16: #{tpu_custom_call.1} parent=1 // pred_region
      _
    $region17: #{tpu_custom_call.1} parent=1 // pred_fallthru
      _
    // Predicated region
    $region18: #{tpu_custom_call.1} parent=1 // pred_check
      _
    $region19: #{tpu_custom_call.1} parent=1 // pred_check_branch
      %32 = sbr.rel (0) target = $region21
    $region20: #{tpu_custom_call.1} parent=1 // pred_region
      _
    $region21: #{tpu_custom_call.1} parent=1 // pred_fallthru
      _
    // Predicated region
    $region22: #{tpu_custom_call.1} parent=1 // pred_check
      _
    $region23: #{tpu_custom_call.1} parent=1 // pred_check_branch
      %34 = sbr.rel (0) target = $region25
    $region24: #{tpu_custom_call.1} parent=1 // pred_region
      _
    $region25: #{tpu_custom_call.1} parent=1 // pred_fallthru
      _
    // Predicated region
    $region26: #{tpu_custom_call.1} parent=1 // pred_check
      _
    $region27: #{tpu_custom_call.1} parent=1 // pred_check_branch
      %36 = sbr.rel (0) target = $region29
    $region28: #{tpu_custom_call.1} parent=1 // pred_region
      %37 = dma.done [#allocation3], 8192
    $region29: #{tpu_custom_call.1} parent=1 // pred_fallthru
      _
    %v38 = vld [vmem:[%s0] sm:$0xff]
    %v39 = vld [vmem:[%s1] sm:$0xff]
    %v40 = vld [vmem:[%s1 + $0x8] sm:$0xff]
    %v41 = vld [vmem:[%s1 + $0x10] sm:$0xff]
    %v42 = vld [vmem:[%s1 + $0x18] sm:$0xff]
    %v43 = vld [vmem:[%s1 + $0x20] sm:$0xff]
    %v44 = vld [vmem:[%s1 + $0x28] sm:$0xff]
    %v45 = vld [vmem:[%s1 + $0x30] sm:$0xff]
    %v46 = vld [vmem:[%s1 + $0x38] sm:$0xff]
    %v47 = vld [vmem:[%s3] sm:$0xf]
    %v49 = vlaneseq
    %v50 = vshrl.u32 %v49, 7
    %v51 = vsub.s32 0, %v50
    %v52 = vrot.slane %v47, %v51
    %v53 = vlaneseq
    %v54 = vshrl.u32 %v53, 7
    %v55 = vsub.s32 1, %v54
    %v56 = vrot.slane %v47, %v55
    %v57 = vlaneseq
    %v58 = vshrl.u32 %v57, 7
    %v59 = vsub.s32 2, %v58
    %v60 = vrot.slane %v47, %v59
    %v61 = vlaneseq
    %v62 = vshrl.u32 %v61, 7
    %v63 = vsub.s32 3, %v62
    %v64 = vrot.slane %v47, %v63
    %vm69 = vcmask 130048
    %v71 = vsel %vm69, %v38, 0
    %73 = vmatprep.subr.mxu0 0.0
    %74 = vmatpush1.msra.mxu0 0.0
    %75 = vmatprep.subr.mxu0 0.0
    %76 = vmatpush1.msra.mxu0 0.0
    %77 = vmatprep.subr.mxu0 0.0
    %78 = vmatpush1.msra.mxu0 0.0
    %79 = vmatprep.subr.mxu0 0.0
    %80 = vmatpush1.msra.mxu0 0.0
    %81 = vmatprep.subr.mxu0 0.0
    %82 = vmatpush1.msra.mxu0 0.0
    %83 = vmatprep.subr.mxu0 0.0
    %84 = vmatpush1.msra.mxu0 0.0
    %85 = vmatprep.subr.mxu0 0.0
    %86 = vmatpush1.msra.mxu0 0.0
    %87 = vmatprep.subr.mxu0 0.0
    %88 = vmatpush1.msra.mxu0 0.0
    %89 = vmatprep.subr.mxu0 0.0
    %90 = vmatpush1.msra.mxu0 0.0
    %91 = vmatprep.subr.mxu0 0.0
    %92 = vmatpush1.msra.mxu0 0.0
    %93 = vmatprep.subr.mxu0 0.0
    %94 = vmatpush1.msra.mxu0 0.0
    %95 = vmatprep.subr.mxu0 0.0
    %96 = vmatpush1.msra.mxu0 0.0
    %97 = vmatprep.subr.mxu0 0.0
    %98 = vmatpush1.msra.mxu0 0.0
    %99 = vmatprep.subr.mxu0 0.0
    %100 = vmatpush1.msra.mxu0 0.0
    %101 = vmatprep.subr.mxu0 %v44
    %102 = vmatpush1.msra.mxu0 %v43
    %103 = vmatprep.subr.mxu0 %v40
    %104 = vmatpush1.msra.mxu0 %v39
    %105 = vmatprep.subr.mxu0 0.0
    %106 = vmatpush2.msra.mxu0 0.0
    %107 = vmatprep.subr.mxu0 0.0
    %108 = vmatpush2.msra.mxu0 0.0
    %109 = vmatprep.subr.mxu0 0.0
    %110 = vmatpush2.msra.mxu0 0.0
    %111 = vmatprep.subr.mxu0 0.0
    %112 = vmatpush2.msra.mxu0 0.0
    %113 = vmatprep.subr.mxu0 0.0
    %114 = vmatpush2.msra.mxu0 0.0
    %115 = vmatprep.subr.mxu0 0.0
    %116 = vmatpush2.msra.mxu0 0.0
    %117 = vmatprep.subr.mxu0 0.0
    %118 = vmatpush2.msra.mxu0 0.0
    %119 = vmatprep.subr.mxu0 0.0
    %120 = vmatpush2.msra.mxu0 0.0
    %121 = vmatprep.subr.mxu0 0.0
    %122 = vmatpush2.msra.mxu0 0.0
    %123 = vmatprep.subr.mxu0 0.0
    %124 = vmatpush2.msra.mxu0 0.0
    %125 = vmatprep.subr.mxu0 0.0
    %126 = vmatpush2.msra.mxu0 0.0
    %127 = vmatprep.subr.mxu0 0.0
    %128 = vmatpush2.msra.mxu0 0.0
    %129 = vmatprep.subr.mxu0 0.0
    %130 = vmatpush2.msra.mxu0 0.0
    %131 = vmatprep.subr.mxu0 0.0
    %132 = vmatpush2.msra.mxu0 0.0
    %133 = vmatprep.subr.mxu0 0.0
    %134 = vmatpush2.msra.mxu0 0.0
    %135 = vmatprep.subr.mxu0 0.0
    %136 = vmatpush2.msra.mxu0 0.0
    %137 = vmatprep.mubr.f32.mxu0 0.0
    %138 = vmatmul.mubr.f32.gmra.mxu0 %v71
    %v139 = vpop.f32.mrf.mxu0
    %v140 = vadd.f32 %v52, %v139
    %v141 = vpop.f32.mrf.mxu0
    %v142 = vadd.f32 %v56, %v141
    %143 = vdwg.mxu0
    %144 = vmatprep.subr.mxu0 0.0
    %145 = vmatpush1.msra.mxu0 0.0
    %146 = vmatprep.subr.mxu0 0.0
    %147 = vmatpush1.msra.mxu0 0.0
    %148 = vmatprep.subr.mxu0 0.0
    %149 = vmatpush1.msra.mxu0 0.0
    %150 = vmatprep.subr.mxu0 0.0
    %151 = vmatpush1.msra.mxu0 0.0
    %152 = vmatprep.subr.mxu0 0.0
    %153 = vmatpush1.msra.mxu0 0.0
    %154 = vmatprep.subr.mxu0 0.0
    %155 = vmatpush1.msra.mxu0 0.0
    %156 = vmatprep.subr.mxu0 0.0
    %157 = vmatpush1.msra.mxu0 0.0
    %158 = vmatprep.subr.mxu0 0.0
    %159 = vmatpush1.msra.mxu0 0.0
    %160 = vmatprep.subr.mxu0 0.0
    %161 = vmatpush1.msra.mxu0 0.0
    %162 = vmatprep.subr.mxu0 0.0
    %163 = vmatpush1.msra.mxu0 0.0
    %164 = vmatprep.subr.mxu0 0.0
    %165 = vmatpush1.msra.mxu0 0.0
    %166 = vmatprep.subr.mxu0 0.0
    %167 = vmatpush1.msra.mxu0 0.0
    %168 = vmatprep.subr.mxu0 0.0
    %169 = vmatpush1.msra.mxu0 0.0
    %170 = vmatprep.subr.mxu0 0.0
    %171 = vmatpush1.msra.mxu0 0.0
    %172 = vmatprep.subr.mxu0 %v46
    %173 = vmatpush1.msra.mxu0 %v45
    %174 = vmatprep.subr.mxu0 %v42
    %175 = vmatpush1.msra.mxu0 %v41
    %176 = vmatprep.subr.mxu0 0.0
    %177 = vmatpush2.msra.mxu0 0.0
    %178 = vmatprep.subr.mxu0 0.0
    %179 = vmatpush2.msra.mxu0 0.0
    %180 = vmatprep.subr.mxu0 0.0
    %181 = vmatpush2.msra.mxu0 0.0
    %182 = vmatprep.subr.mxu0 0.0
    %183 = vmatpush2.msra.mxu0 0.0
    %184 = vmatprep.subr.mxu0 0.0
    %185 = vmatpush2.msra.mxu0 0.0
    %186 = vmatprep.subr.mxu0 0.0
    %187 = vmatpush2.msra.mxu0 0.0
    %188 = vmatprep.subr.mxu0 0.0
    %189 = vmatpush2.msra.mxu0 0.0
    %190 = vmatprep.subr.mxu0 0.0
    %191 = vmatpush2.msra.mxu0 0.0
    %192 = vmatprep.subr.mxu0 0.0
    %193 = vmatpush2.msra.mxu0 0.0
    %194 = vmatprep.subr.mxu0 0.0
    %195 = vmatpush2.msra.mxu0 0.0
    %196 = vmatprep.subr.mxu0 0.0
    %197 = vmatpush2.msra.mxu0 0.0
    %198 = vmatprep.subr.mxu0 0.0
    %199 = vmatpush2.msra.mxu0 0.0
    %200 = vmatprep.subr.mxu0 0.0
    %201 = vmatpush2.msra.mxu0 0.0
    %202 = vmatprep.subr.mxu0 0.0
    %203 = vmatpush2.msra.mxu0 0.0
    %204 = vmatprep.subr.mxu0 0.0
    %205 = vmatpush2.msra.mxu0 0.0
    %206 = vmatprep.subr.mxu0 0.0
    %207 = vmatpush2.msra.mxu0 0.0
    %208 = vmatprep.mubr.f32.mxu0 0.0
    %209 = vmatmul.mubr.f32.gmra.mxu0 %v71
    %v210 = vpop.f32.mrf.mxu0
    %v211 = vadd.f32 %v60, %v210
    %v212 = vpop.f32.mrf.mxu0
    %v213 = vadd.f32 %v64, %v212
    %214 = vdwg.mxu0
    %v215 = vld [vmem:[#allocation2] sm:$0xff]
    %v216 = vld [vmem:[#allocation2 + $0x8] sm:$0xff]
    %v217 = vld [vmem:[#allocation2 + $0x10] sm:$0xff]
    %v218 = vld [vmem:[#allocation2 + $0x18] sm:$0xff]
    %v219 = vld [vmem:[#allocation2 + $0x20] sm:$0xff]
    %v220 = vld [vmem:[#allocation2 + $0x28] sm:$0xff]
    %v221 = vld [vmem:[#allocation2 + $0x30] sm:$0xff]
    %v222 = vld [vmem:[#allocation2 + $0x38] sm:$0xff]
    %v223 = vld [vmem:[#allocation2 + $0x40] sm:$0xff]
    %v224 = vld [vmem:[#allocation2 + $0x48] sm:$0xff]
    %v225 = vld [vmem:[#allocation2 + $0x50] sm:$0xff]
    %v226 = vld [vmem:[#allocation2 + $0x58] sm:$0xff]
    %v227 = vld [vmem:[#allocation2 + $0x60] sm:$0xff]
    %v228 = vld [vmem:[#allocation2 + $0x68] sm:$0xff]
    %v229 = vld [vmem:[#allocation2 + $0x70] sm:$0xff]
    %v230 = vld [vmem:[#allocation2 + $0x78] sm:$0xff]
    %v231 = vld [vmem:[#allocation2 + $0x80] sm:$0xff]
    %v232 = vld [vmem:[#allocation2 + $0x88] sm:$0xff]
    %v233 = vld [vmem:[#allocation2 + $0x90] sm:$0xff]
    %v234 = vld [vmem:[#allocation2 + $0x98] sm:$0xff]
    %v235 = vld [vmem:[#allocation2 + $0xa0] sm:$0xff]
    %v236 = vld [vmem:[#allocation2 + $0xa8] sm:$0xff]
    %v237 = vld [vmem:[#allocation2 + $0xb0] sm:$0xff]
    %v238 = vld [vmem:[#allocation2 + $0xb8] sm:$0xff]
    %v239 = vld [vmem:[#allocation2 + $0xc0] sm:$0xff]
    %v240 = vld [vmem:[#allocation2 + $0xc8] sm:$0xff]
    %v241 = vld [vmem:[#allocation2 + $0xd0] sm:$0xff]
    %v242 = vld [vmem:[#allocation2 + $0xd8] sm:$0xff]
    %v243 = vld [vmem:[#allocation2 + $0xe0] sm:$0xff]
    %v244 = vld [vmem:[#allocation2 + $0xe8] sm:$0xff]
    %v245 = vld [vmem:[#allocation2 + $0xf0] sm:$0xff]
    %v246 = vld [vmem:[#allocation2 + $0xf8] sm:$0xff]
    %v247 = vld [vmem:[#allocation2 + $0x100] sm:$0xff]
    %v248 = vld [vmem:[#allocation2 + $0x108] sm:$0xff]
    %v249 = vld [vmem:[#allocation2 + $0x110] sm:$0xff]
    %v250 = vld [vmem:[#allocation2 + $0x118] sm:$0xff]
    %v251 = vld [vmem:[#allocation2 + $0x120] sm:$0xff]
    %v252 = vld [vmem:[#allocation2 + $0x128] sm:$0xff]
    %v253 = vld [vmem:[#allocation2 + $0x130] sm:$0xff]
    %v254 = vld [vmem:[#allocation2 + $0x138] sm:$0xff]
    %v255 = vld [vmem:[#allocation2 + $0x140] sm:$0xff]
    %v256 = vld [vmem:[#allocation2 + $0x148] sm:$0xff]
    %v257 = vld [vmem:[#allocation2 + $0x150] sm:$0xff]
    %v258 = vld [vmem:[#allocation2 + $0x158] sm:$0xff]
    %v259 = vld [vmem:[#allocation2 + $0x160] sm:$0xff]
    %v260 = vld [vmem:[#allocation2 + $0x168] sm:$0xff]
    %v261 = vld [vmem:[#allocation2 + $0x170] sm:$0xff]
    %v262 = vld [vmem:[#allocation2 + $0x178] sm:$0xff]
    %v263 = vld [vmem:[#allocation2 + $0x180] sm:$0xff]
    %v264 = vld [vmem:[#allocation2 + $0x188] sm:$0xff]
    %v265 = vld [vmem:[#allocation2 + $0x190] sm:$0xff]
    %v266 = vld [vmem:[#allocation2 + $0x198] sm:$0xff]
    %v267 = vld [vmem:[#allocation2 + $0x1a0] sm:$0xff]
    %v268 = vld [vmem:[#allocation2 + $0x1a8] sm:$0xff]
    %v269 = vld [vmem:[#allocation2 + $0x1b0] sm:$0xff]
    %v270 = vld [vmem:[#allocation2 + $0x1b8] sm:$0xff]
    %v271 = vld [vmem:[#allocation2 + $0x1c0] sm:$0xff]
    %v272 = vld [vmem:[#allocation2 + $0x1c8] sm:$0xff]
    %v273 = vld [vmem:[#allocation2 + $0x1d0] sm:$0xff]
    %v274 = vld [vmem:[#allocation2 + $0x1d8] sm:$0xff]
    %v275 = vld [vmem:[#allocation2 + $0x1e0] sm:$0xff]
    %v276 = vld [vmem:[#allocation2 + $0x1e8] sm:$0xff]
    %v277 = vld [vmem:[#allocation2 + $0x1f0] sm:$0xff]
    %v278 = vld [vmem:[#allocation2 + $0x1f8] sm:$0xff]
    %279 = vmatprep.subr.mxu0 %v276
    %280 = vmatpush1.msra.mxu0 %v275
    %281 = vmatprep.subr.mxu0 %v272
    %282 = vmatpush1.msra.mxu0 %v271
    %283 = vmatprep.subr.mxu0 %v268
    %284 = vmatpush1.msra.mxu0 %v267
    %285 = vmatprep.subr.mxu0 %v264
    %286 = vmatpush1.msra.mxu0 %v263
    %287 = vmatprep.subr.mxu0 %v260
    %288 = vmatpush1.msra.mxu0 %v259
    %289 = vmatprep.subr.mxu0 %v256
    %290 = vmatpush1.msra.mxu0 %v255
    %291 = vmatprep.subr.mxu0 %v252
    %292 = vmatpush1.msra.mxu0 %v251
    %293 = vmatprep.subr.mxu0 %v248
    %294 = vmatpush1.msra.mxu0 %v247
    %295 = vmatprep.subr.mxu0 %v244
    %296 = vmatpush1.msra.mxu0 %v243
    %297 = vmatprep.subr.mxu0 %v240
    %298 = vmatpush1.msra.mxu0 %v239
    %299 = vmatprep.subr.mxu0 %v236
    %300 = vmatpush1.msra.mxu0 %v235
    %301 = vmatprep.subr.mxu0 %v232
    %302 = vmatpush1.msra.mxu0 %v231
    %303 = vmatprep.subr.mxu0 %v228
    %304 = vmatpush1.msra.mxu0 %v227
    %305 = vmatprep.subr.mxu0 %v224
    %306 = vmatpush1.msra.mxu0 %v223
    %307 = vmatprep.subr.mxu0 %v220
    %308 = vmatpush1.msra.mxu0 %v219
    %309 = vmatprep.subr.mxu0 %v216
    %310 = vmatpush1.msra.mxu0 %v215
    %311 = vmatprep.subr.mxu0 0.0
    %312 = vmatpush2.msra.mxu0 0.0
    %313 = vmatprep.subr.mxu0 0.0
    %314 = vmatpush2.msra.mxu0 0.0
    %315 = vmatprep.subr.mxu0 0.0
    %316 = vmatpush2.msra.mxu0 0.0
    %317 = vmatprep.subr.mxu0 0.0
    %318 = vmatpush2.msra.mxu0 0.0
    %319 = vmatprep.subr.mxu0 0.0
    %320 = vmatpush2.msra.mxu0 0.0
    %321 = vmatprep.subr.mxu0 0.0
    %322 = vmatpush2.msra.mxu0 0.0
    %323 = vmatprep.subr.mxu0 0.0
    %324 = vmatpush2.msra.mxu0 0.0
    %325 = vmatprep.subr.mxu0 0.0
    %326 = vmatpush2.msra.mxu0 0.0
    %327 = vmatprep.subr.mxu0 0.0
    %328 = vmatpush2.msra.mxu0 0.0
    %329 = vmatprep.subr.mxu0 0.0
    %330 = vmatpush2.msra.mxu0 0.0
    %331 = vmatprep.subr.mxu0 0.0
    %332 = vmatpush2.msra.mxu0 0.0
    %333 = vmatprep.subr.mxu0 0.0
    %334 = vmatpush2.msra.mxu0 0.0
    %335 = vmatprep.subr.mxu0 0.0
    %336 = vmatpush2.msra.mxu0 0.0
    %337 = vmatprep.subr.mxu0 0.0
    %338 = vmatpush2.msra.mxu0 0.0
    %339 = vmatprep.subr.mxu0 0.0
    %340 = vmatpush2.msra.mxu0 0.0
    %341 = vmatprep.subr.mxu0 0.0
    %342 = vmatpush2.msra.mxu0 0.0
    %343 = vmatprep.mubr.f32.mxu0 0.0
    %344 = vmatmul.mubr.f32.gmra.mxu0 0.0
    %v345 = vpop.f32.mrf.mxu0
    %v346 = vadd.f32 0.0, %v345
    %v347 = vpop.f32.mrf.mxu0
    %v348 = vadd.f32 0.0, %v347
    %349 = vdwg.mxu0
    %350 = vmatprep.subr.mxu0 %v278
    %351 = vmatpush1.msra.mxu0 %v277
    %352 = vmatprep.subr.mxu0 %v274
    %353 = vmatpush1.msra.mxu0 %v273
    %354 = vmatprep.subr.mxu0 %v270
    %355 = vmatpush1.msra.mxu0 %v269
    %356 = vmatprep.subr.mxu0 %v266
    %357 = vmatpush1.msra.mxu0 %v265
    %358 = vmatprep.subr.mxu0 %v262
    %359 = vmatpush1.msra.mxu0 %v261
    %360 = vmatprep.subr.mxu0 %v258
    %361 = vmatpush1.msra.mxu0 %v257
    %362 = vmatprep.subr.mxu0 %v254
    %363 = vmatpush1.msra.mxu0 %v253
    %364 = vmatprep.subr.mxu0 %v250
    %365 = vmatpush1.msra.mxu0 %v249
    %366 = vmatprep.subr.mxu0 %v246
    %367 = vmatpush1.msra.mxu0 %v245
    %368 = vmatprep.subr.mxu0 %v242
    %369 = vmatpush1.msra.mxu0 %v241
    %370 = vmatprep.subr.mxu0 %v238
    %371 = vmatpush1.msra.mxu0 %v237
    %372 = vmatprep.subr.mxu0 %v234
    %373 = vmatpush1.msra.mxu0 %v233
    %374 = vmatprep.subr.mxu0 %v230
    %375 = vmatpush1.msra.mxu0 %v229
    %376 = vmatprep.subr.mxu0 %v226
    %377 = vmatpush1.msra.mxu0 %v225
    %378 = vmatprep.subr.mxu0 %v222
    %379 = vmatpush1.msra.mxu0 %v221
    %380 = vmatprep.subr.mxu0 %v218
    %381 = vmatpush1.msra.mxu0 %v217
    %382 = vmatprep.subr.mxu0 0.0
    %383 = vmatpush2.msra.mxu0 0.0
    %384 = vmatprep.subr.mxu0 0.0
    %385 = vmatpush2.msra.mxu0 0.0
    %386 = vmatprep.subr.mxu0 0.0
    %387 = vmatpush2.msra.mxu0 0.0
    %388 = vmatprep.subr.mxu0 0.0
    %389 = vmatpush2.msra.mxu0 0.0
    %390 = vmatprep.subr.mxu0 0.0
    %391 = vmatpush2.msra.mxu0 0.0
    %392 = vmatprep.subr.mxu0 0.0
    %393 = vmatpush2.msra.mxu0 0.0
    %394 = vmatprep.subr.mxu0 0.0
    %395 = vmatpush2.msra.mxu0 0.0
    %396 = vmatprep.subr.mxu0 0.0
    %397 = vmatpush2.msra.mxu0 0.0
    %398 = vmatprep.subr.mxu0 0.0
    %399 = vmatpush2.msra.mxu0 0.0
    %400 = vmatprep.subr.mxu0 0.0
    %401 = vmatpush2.msra.mxu0 0.0
    %402 = vmatprep.subr.mxu0 0.0
    %403 = vmatpush2.msra.mxu0 0.0
    %404 = vmatprep.subr.mxu0 0.0
    %405 = vmatpush2.msra.mxu0 0.0
    %406 = vmatprep.subr.mxu0 0.0
    %407 = vmatpush2.msra.mxu0 0.0
    %408 = vmatprep.subr.mxu0 0.0
    %409 = vmatpush2.msra.mxu0 0.0
    %410 = vmatprep.subr.mxu0 0.0
    %411 = vmatpush2.msra.mxu0 0.0
    %412 = vmatprep.subr.mxu0 0.0
    %413 = vmatpush2.msra.mxu0 0.0
    %414 = vmatprep.mubr.f32.mxu0 0.0
    %415 = vmatmul.mubr.f32.gmra.mxu0 0.0
    %v416 = vpop.f32.mrf.mxu0
    %v417 = vadd.f32 0.0, %v416
    %v418 = vpop.f32.mrf.mxu0
    %v419 = vadd.f32 0.0, %v418
    %420 = vdwg.mxu0
    %v421 = vadd.f32 %v140, %v346
    %v422 = vadd.f32 %v142, %v348
    %v423 = vadd.f32 %v211, %v417
    %v424 = vadd.f32 %v213, %v419
    %v425 = vmul.f32 %v421, 0.5
    %v426 = vtanh.pop %v425
    %v427 = vadd.f32 %v426, 1.0
    %v428 = vmul.f32 %v427, 0.5
    %v429 = vmul.f32 %v422, 0.5
    %v430 = vtanh.pop %v429
    %v431 = vadd.f32 %v430, 1.0
    %v432 = vmul.f32 %v431, 0.5
    %v433 = vtanh.pop %v423
    %v434 = vmul.f32 %v424, 0.5
    %v435 = vtanh.pop %v434
    %v436 = vadd.f32 %v435, 1.0
    %v437 = vmul.f32 %v436, 0.5
    %v438 = vmul.f32 %v432, 0.0
    %v439 = vmul.f32 %v428, %v433
    %v440 = vadd.f32 %v438, %v439
    %v441 = vtanh.pop %v440
    %v442 = vmul.f32 %v437, %v441
    %443 = vmatprep.subr.mxu0 %v276
    %444 = vmatpush1.msra.mxu0 %v275
    %445 = vmatprep.subr.mxu0 %v272
    %446 = vmatpush1.msra.mxu0 %v271
    %447 = vmatprep.subr.mxu0 %v268
    %448 = vmatpush1.msra.mxu0 %v267
    %449 = vmatprep.subr.mxu0 %v264
    %450 = vmatpush1.msra.mxu0 %v263
    %451 = vmatprep.subr.mxu0 %v260
    %452 = vmatpush1.msra.mxu0 %v259
    %453 = vmatprep.subr.mxu0 %v256
    %454 = vmatpush1.msra.mxu0 %v255
    %455 = vmatprep.subr.mxu0 %v252
    %456 = vmatpush1.msra.mxu0 %v251
    %457 = vmatprep.subr.mxu0 %v248
    %458 = vmatpush1.msra.mxu0 %v247
    %459 = vmatprep.subr.mxu0 %v244
    %460 = vmatpush1.msra.mxu0 %v243
    %461 = vmatprep.subr.mxu0 %v240
    %462 = vmatpush1.msra.mxu0 %v239
    %463 = vmatprep.subr.mxu0 %v236
    %464 = vmatpush1.msra.mxu0 %v235
    %465 = vmatprep.subr.mxu0 %v232
    %466 = vmatpush1.msra.mxu0 %v231
    %467 = vmatprep.subr.mxu0 %v228
    %468 = vmatpush1.msra.mxu0 %v227
    %469 = vmatprep.subr.mxu0 %v224
    %470 = vmatpush1.msra.mxu0 %v223
    %471 = vmatprep.subr.mxu0 %v220
    %472 = vmatpush1.msra.mxu0 %v219
    %473 = vmatprep.subr.mxu0 %v216
    %474 = vmatpush1.msra.mxu0 %v215
    %475 = vmatprep.subr.mxu0 0.0
    %476 = vmatpush2.msra.mxu0 0.0
    %477 = vmatprep.subr.mxu0 0.0
    %478 = vmatpush2.msra.mxu0 0.0
    %479 = vmatprep.subr.mxu0 0.0
    %480 = vmatpush2.msra.mxu0 0.0
    %481 = vmatprep.subr.mxu0 0.0
    %482 = vmatpush2.msra.mxu0 0.0
    %483 = vmatprep.subr.mxu0 0.0
    %484 = vmatpush2.msra.mxu0 0.0
    %485 = vmatprep.subr.mxu0 0.0
    %486 = vmatpush2.msra.mxu0 0.0
    %487 = vmatprep.subr.mxu0 0.0
    %488 = vmatpush2.msra.mxu0 0.0
    %489 = vmatprep.subr.mxu0 0.0
    %490 = vmatpush2.msra.mxu0 0.0
    %491 = vmatprep.subr.mxu0 0.0
    %492 = vmatpush2.msra.mxu0 0.0
    %493 = vmatprep.subr.mxu0 0.0
    %494 = vmatpush2.msra.mxu0 0.0
    %495 = vmatprep.subr.mxu0 0.0
    %496 = vmatpush2.msra.mxu0 0.0
    %497 = vmatprep.subr.mxu0 0.0
    %498 = vmatpush2.msra.mxu0 0.0
    %499 = vmatprep.subr.mxu0 0.0
    %500 = vmatpush2.msra.mxu0 0.0
    %501 = vmatprep.subr.mxu0 0.0
    %502 = vmatpush2.msra.mxu0 0.0
    %503 = vmatprep.subr.mxu0 0.0
    %504 = vmatpush2.msra.mxu0 0.0
    %505 = vmatprep.subr.mxu0 0.0
    %506 = vmatpush2.msra.mxu0 0.0
    %507 = vmatprep.mubr.f32.mxu0 0.0
    %508 = vmatmul.mubr.f32.gmra.mxu0 %v442
    %v509 = vpop.f32.mrf.mxu0
    %v510 = vadd.f32 0.0, %v509
    %v511 = vpop.f32.mrf.mxu0
    %v512 = vadd.f32 0.0, %v511
    %513 = vdwg.mxu0
    %514 = vmatprep.subr.mxu0 %v278
    %515 = vmatpush1.msra.mxu0 %v277
    %516 = vmatprep.subr.mxu0 %v274
    %517 = vmatpush1.msra.mxu0 %v273
    %518 = vmatprep.subr.mxu0 %v270
    %519 = vmatpush1.msra.mxu0 %v269
    %520 = vmatprep.subr.mxu0 %v266
    %521 = vmatpush1.msra.mxu0 %v265
    %522 = vmatprep.subr.mxu0 %v262
    %523 = vmatpush1.msra.mxu0 %v261
    %524 = vmatprep.subr.mxu0 %v258
    %525 = vmatpush1.msra.mxu0 %v257
    %526 = vmatprep.subr.mxu0 %v254
    %527 = vmatpush1.msra.mxu0 %v253
    %528 = vmatprep.subr.mxu0 %v250
    %529 = vmatpush1.msra.mxu0 %v249
    %530 = vmatprep.subr.mxu0 %v246
    %531 = vmatpush1.msra.mxu0 %v245
    %532 = vmatprep.subr.mxu0 %v242
    %533 = vmatpush1.msra.mxu0 %v241
    %534 = vmatprep.subr.mxu0 %v238
    %535 = vmatpush1.msra.mxu0 %v237
    %536 = vmatprep.subr.mxu0 %v234
    %537 = vmatpush1.msra.mxu0 %v233
    %538 = vmatprep.subr.mxu0 %v230
    %539 = vmatpush1.msra.mxu0 %v229
    %540 = vmatprep.subr.mxu0 %v226
    %541 = vmatpush1.msra.mxu0 %v225
    %542 = vmatprep.subr.mxu0 %v222
    %543 = vmatpush1.msra.mxu0 %v221
    %544 = vmatprep.subr.mxu0 %v218
    %545 = vmatpush1.msra.mxu0 %v217
    %546 = vmatprep.subr.mxu0 0.0
    %547 = vmatpush2.msra.mxu0 0.0
    %548 = vmatprep.subr.mxu0 0.0
    %549 = vmatpush2.msra.mxu0 0.0
    %550 = vmatprep.subr.mxu0 0.0
    %551 = vmatpush2.msra.mxu0 0.0
    %552 = vmatprep.subr.mxu0 0.0
    %553 = vmatpush2.msra.mxu0 0.0
    %554 = vmatprep.subr.mxu0 0.0
    %555 = vmatpush2.msra.mxu0 0.0
    %556 = vmatprep.subr.mxu0 0.0
    %557 = vmatpush2.msra.mxu0 0.0
    %558 = vmatprep.subr.mxu0 0.0
    %559 = vmatpush2.msra.mxu0 0.0
    %560 = vmatprep.subr.mxu0 0.0
    %561 = vmatpush2.msra.mxu0 0.0
    %562 = vmatprep.subr.mxu0 0.0
    %563 = vmatpush2.msra.mxu0 0.0
    %564 = vmatprep.subr.mxu0 0.0
    %565 = vmatpush2.msra.mxu0 0.0
    %566 = vmatprep.subr.mxu0 0.0
    %567 = vmatpush2.msra.mxu0 0.0
    %568 = vmatprep.subr.mxu0 0.0
    %569 = vmatpush2.msra.mxu0 0.0
    %570 = vmatprep.subr.mxu0 0.0
    %571 = vmatpush2.msra.mxu0 0.0
    %572 = vmatprep.subr.mxu0 0.0
    %573 = vmatpush2.msra.mxu0 0.0
    %574 = vmatprep.subr.mxu0 0.0
    %575 = vmatpush2.msra.mxu0 0.0
    %576 = vmatprep.subr.mxu0 0.0
    %577 = vmatpush2.msra.mxu0 0.0
    %578 = vmatprep.mubr.f32.mxu0 0.0
    %579 = vmatmul.mubr.f32.gmra.mxu0 %v442
    %v580 = vpop.f32.mrf.mxu0
    %v581 = vadd.f32 0.0, %v580
    %v582 = vpop.f32.mrf.mxu0
    %v583 = vadd.f32 0.0, %v582
    %584 = vdwg.mxu0
    %v589 = vrot.slane %v510, 7
    %v590 = vrot.slane %v512, 7
    %v591 = vrot.slane %v581, 7
    %v592 = vrot.slane %v583, 7
    %v597 = vadd.f32 %v140, %v589
    %v598 = vadd.f32 %v142, %v590
    %v599 = vadd.f32 %v211, %v591
    %v600 = vadd.f32 %v213, %v592
    %v601 = vmul.f32 %v597, 0.5
    %v602 = vtanh.pop %v601
    %v603 = vadd.f32 %v602, 1.0
    %v604 = vmul.f32 %v603, 0.5
    %v605 = vmul.f32 %v598, 0.5
    %v606 = vtanh.pop %v605
    %v607 = vadd.f32 %v606, 1.0
    %v608 = vmul.f32 %v607, 0.5
    %v609 = vtanh.pop %v599
    %v610 = vmul.f32 %v600, 0.5
    %v611 = vtanh.pop %v610
    %v612 = vadd.f32 %v611, 1.0
    %v613 = vmul.f32 %v612, 0.5
    %v615 = vrot.slane %v440, 7
    %v617 = vmul.f32 %v608, %v615
    %v618 = vmul.f32 %v604, %v609
    %v619 = vadd.f32 %v617, %v618
    %v620 = vtanh.pop %v619
    %v621 = vmul.f32 %v613, %v620
    %v623 = vrot.slane %v621, 1
    %625 = vmatprep.subr.mxu0 %v276
    %626 = vmatpush1.msra.mxu0 %v275
    %627 = vmatprep.subr.mxu0 %v272
    %628 = vmatpush1.msra.mxu0 %v271
    %629 = vmatprep.subr.mxu0 %v268
    %630 = vmatpush1.msra.mxu0 %v267
    %631 = vmatprep.subr.mxu0 %v264
    %632 = vmatpush1.msra.mxu0 %v263
    %633 = vmatprep.subr.mxu0 %v260
    %634 = vmatpush1.msra.mxu0 %v259
    %635 = vmatprep.subr.mxu0 %v256
    %636 = vmatpush1.msra.mxu0 %v255
    %637 = vmatprep.subr.mxu0 %v252
    %638 = vmatpush1.msra.mxu0 %v251
    %639 = vmatprep.subr.mxu0 %v248
    %640 = vmatpush1.msra.mxu0 %v247
    %641 = vmatprep.subr.mxu0 %v244
    %642 = vmatpush1.msra.mxu0 %v243
    %643 = vmatprep.subr.mxu0 %v240
    %644 = vmatpush1.msra.mxu0 %v239
    %645 = vmatprep.subr.mxu0 %v236
    %646 = vmatpush1.msra.mxu0 %v235
    %647 = vmatprep.subr.mxu0 %v232
    %648 = vmatpush1.msra.mxu0 %v231
    %649 = vmatprep.subr.mxu0 %v228
    %650 = vmatpush1.msra.mxu0 %v227
    %651 = vmatprep.subr.mxu0 %v224
    %652 = vmatpush1.msra.mxu0 %v223
    %653 = vmatprep.subr.mxu0 %v220
    %654 = vmatpush1.msra.mxu0 %v219
    %655 = vmatprep.subr.mxu0 %v216
    %656 = vmatpush1.msra.mxu0 %v215
    %657 = vmatprep.subr.mxu0 0.0
    %658 = vmatpush2.msra.mxu0 0.0
    %659 = vmatprep.subr.mxu0 0.0
    %660 = vmatpush2.msra.mxu0 0.0
    %661 = vmatprep.subr.mxu0 0.0
    %662 = vmatpush2.msra.mxu0 0.0
    %663 = vmatprep.subr.mxu0 0.0
    %664 = vmatpush2.msra.mxu0 0.0
    %665 = vmatprep.subr.mxu0 0.0
    %666 = vmatpush2.msra.mxu0 0.0
    %667 = vmatprep.subr.mxu0 0.0
    %668 = vmatpush2.msra.mxu0 0.0
    %669 = vmatprep.subr.mxu0 0.0
    %670 = vmatpush2.msra.mxu0 0.0
    %671 = vmatprep.subr.mxu0 0.0
    %672 = vmatpush2.msra.mxu0 0.0
    %673 = vmatprep.subr.mxu0 0.0
    %674 = vmatpush2.msra.mxu0 0.0
    %675 = vmatprep.subr.mxu0 0.0
    %676 = vmatpush2.msra.mxu0 0.0
    %677 = vmatprep.subr.mxu0 0.0
    %678 = vmatpush2.msra.mxu0 0.0
    %679 = vmatprep.subr.mxu0 0.0
    %680 = vmatpush2.msra.mxu0 0.0
    %681 = vmatprep.subr.mxu0 0.0
    %682 = vmatpush2.msra.mxu0 0.0
    %683 = vmatprep.subr.mxu0 0.0
    %684 = vmatpush2.msra.mxu0 0.0
    %685 = vmatprep.subr.mxu0 0.0
    %686 = vmatpush2.msra.mxu0 0.0
    %687 = vmatprep.subr.mxu0 0.0
    %688 = vmatpush2.msra.mxu0 0.0
    %689 = vmatprep.mubr.f32.mxu0 0.0
    %690 = vmatmul.mubr.f32.gmra.mxu0 %v623
    %v691 = vpop.f32.mrf.mxu0
    %v692 = vadd.f32 0.0, %v691
    %v693 = vpop.f32.mrf.mxu0
    %v694 = vadd.f32 0.0, %v693
    %695 = vdwg.mxu0
    %696 = vmatprep.subr.mxu0 %v278
    %697 = vmatpush1.msra.mxu0 %v277
    %698 = vmatprep.subr.mxu0 %v274
    %699 = vmatpush1.msra.mxu0 %v273
    %700 = vmatprep.subr.mxu0 %v270
    %701 = vmatpush1.msra.mxu0 %v269
    %702 = vmatprep.subr.mxu0 %v266
    %703 = vmatpush1.msra.mxu0 %v265
    %704 = vmatprep.subr.mxu0 %v262
    %705 = vmatpush1.msra.mxu0 %v261
    %706 = vmatprep.subr.mxu0 %v258
    %707 = vmatpush1.msra.mxu0 %v257
    %708 = vmatprep.subr.mxu0 %v254
    %709 = vmatpush1.msra.mxu0 %v253
    %710 = vmatprep.subr.mxu0 %v250
    %711 = vmatpush1.msra.mxu0 %v249
    %712 = vmatprep.subr.mxu0 %v246
    %713 = vmatpush1.msra.mxu0 %v245
    %714 = vmatprep.subr.mxu0 %v242
    %715 = vmatpush1.msra.mxu0 %v241
    %716 = vmatprep.subr.mxu0 %v238
    %717 = vmatpush1.msra.mxu0 %v237
    %718 = vmatprep.subr.mxu0 %v234
    %719 = vmatpush1.msra.mxu0 %v233
    %720 = vmatprep.subr.mxu0 %v230
    %721 = vmatpush1.msra.mxu0 %v229
    %722 = vmatprep.subr.mxu0 %v226
    %723 = vmatpush1.msra.mxu0 %v225
    %724 = vmatprep.subr.mxu0 %v222
    %725 = vmatpush1.msra.mxu0 %v221
    %726 = vmatprep.subr.mxu0 %v218
    %727 = vmatpush1.msra.mxu0 %v217
    %728 = vmatprep.subr.mxu0 0.0
    %729 = vmatpush2.msra.mxu0 0.0
    %730 = vmatprep.subr.mxu0 0.0
    %731 = vmatpush2.msra.mxu0 0.0
    %732 = vmatprep.subr.mxu0 0.0
    %733 = vmatpush2.msra.mxu0 0.0
    %734 = vmatprep.subr.mxu0 0.0
    %735 = vmatpush2.msra.mxu0 0.0
    %736 = vmatprep.subr.mxu0 0.0
    %737 = vmatpush2.msra.mxu0 0.0
    %738 = vmatprep.subr.mxu0 0.0
    %739 = vmatpush2.msra.mxu0 0.0
    %740 = vmatprep.subr.mxu0 0.0
    %741 = vmatpush2.msra.mxu0 0.0
    %742 = vmatprep.subr.mxu0 0.0
    %743 = vmatpush2.msra.mxu0 0.0
    %744 = vmatprep.subr.mxu0 0.0
    %745 = vmatpush2.msra.mxu0 0.0
    %746 = vmatprep.subr.mxu0 0.0
    %747 = vmatpush2.msra.mxu0 0.0
    %748 = vmatprep.subr.mxu0 0.0
    %749 = vmatpush2.msra.mxu0 0.0
    %750 = vmatprep.subr.mxu0 0.0
    %751 = vmatpush2.msra.mxu0 0.0
    %752 = vmatprep.subr.mxu0 0.0
    %753 = vmatpush2.msra.mxu0 0.0
    %754 = vmatprep.subr.mxu0 0.0
    %755 = vmatpush2.msra.mxu0 0.0
    %756 = vmatprep.subr.mxu0 0.0
    %757 = vmatpush2.msra.mxu0 0.0
    %758 = vmatprep.subr.mxu0 0.0
    %759 = vmatpush2.msra.mxu0 0.0
    %760 = vmatprep.mubr.f32.mxu0 0.0
    %761 = vmatmul.mubr.f32.gmra.mxu0 %v623
    %v762 = vpop.f32.mrf.mxu0
    %v763 = vadd.f32 0.0, %v762
    %v764 = vpop.f32.mrf.mxu0
    %v765 = vadd.f32 0.0, %v764
    %766 = vdwg.mxu0
    %v771 = vrot.slane %v692, 6
    %v772 = vrot.slane %v694, 6
    %v773 = vrot.slane %v763, 6
    %v774 = vrot.slane %v765, 6
    %v779 = vadd.f32 %v140, %v771
    %v780 = vadd.f32 %v142, %v772
    %v781 = vadd.f32 %v211, %v773
    %v782 = vadd.f32 %v213, %v774
    %v783 = vmul.f32 %v779, 0.5
    %v784 = vtanh.pop %v783
    %v785 = vadd.f32 %v784, 1.0
    %v786 = vmul.f32 %v785, 0.5
    %v787 = vmul.f32 %v780, 0.5
    %v788 = vtanh.pop %v787
    %v789 = vadd.f32 %v788, 1.0
    %v790 = vmul.f32 %v789, 0.5
    %v791 = vtanh.pop %v781
    %v792 = vmul.f32 %v782, 0.5
    %v793 = vtanh.pop %v792
    %v794 = vadd.f32 %v793, 1.0
    %v795 = vmul.f32 %v794, 0.5
    %v797 = vrot.slane %v619, 7
    %v799 = vmul.f32 %v790, %v797
    %v800 = vmul.f32 %v786, %v791
    %v801 = vadd.f32 %v799, %v800
    %v802 = vtanh.pop %v801
    %v803 = vmul.f32 %v795, %v802
    %v805 = vrot.slane %v803, 2
    %807 = vmatprep.subr.mxu0 %v276
    %808 = vmatpush1.msra.mxu0 %v275
    %809 = vmatprep.subr.mxu0 %v272
    %810 = vmatpush1.msra.mxu0 %v271
    %811 = vmatprep.subr.mxu0 %v268
    %812 = vmatpush1.msra.mxu0 %v267
    %813 = vmatprep.subr.mxu0 %v264
    %814 = vmatpush1.msra.mxu0 %v263
    %815 = vmatprep.subr.mxu0 %v260
    %816 = vmatpush1.msra.mxu0 %v259
    %817 = vmatprep.subr.mxu0 %v256
    %818 = vmatpush1.msra.mxu0 %v255
    %819 = vmatprep.subr.mxu0 %v252
    %820 = vmatpush1.msra.mxu0 %v251
    %821 = vmatprep.subr.mxu0 %v248
    %822 = vmatpush1.msra.mxu0 %v247
    %823 = vmatprep.subr.mxu0 %v244
    %824 = vmatpush1.msra.mxu0 %v243
    %825 = vmatprep.subr.mxu0 %v240
    %826 = vmatpush1.msra.mxu0 %v239
    %827 = vmatprep.subr.mxu0 %v236
    %828 = vmatpush1.msra.mxu0 %v235
    %829 = vmatprep.subr.mxu0 %v232
    %830 = vmatpush1.msra.mxu0 %v231
    %831 = vmatprep.subr.mxu0 %v228
    %832 = vmatpush1.msra.mxu0 %v227
    %833 = vmatprep.subr.mxu0 %v224
    %834 = vmatpush1.msra.mxu0 %v223
    %835 = vmatprep.subr.mxu0 %v220
    %836 = vmatpush1.msra.mxu0 %v219
    %837 = vmatprep.subr.mxu0 %v216
    %838 = vmatpush1.msra.mxu0 %v215
    %839 = vmatprep.subr.mxu0 0.0
    %840 = vmatpush2.msra.mxu0 0.0
    %841 = vmatprep.subr.mxu0 0.0
    %842 = vmatpush2.msra.mxu0 0.0
    %843 = vmatprep.subr.mxu0 0.0
    %844 = vmatpush2.msra.mxu0 0.0
    %845 = vmatprep.subr.mxu0 0.0
    %846 = vmatpush2.msra.mxu0 0.0
    %847 = vmatprep.subr.mxu0 0.0
    %848 = vmatpush2.msra.mxu0 0.0
    %849 = vmatprep.subr.mxu0 0.0
    %850 = vmatpush2.msra.mxu0 0.0
    %851 = vmatprep.subr.mxu0 0.0
    %852 = vmatpush2.msra.mxu0 0.0
    %853 = vmatprep.subr.mxu0 0.0
    %854 = vmatpush2.msra.mxu0 0.0
    %855 = vmatprep.subr.mxu0 0.0
    %856 = vmatpush2.msra.mxu0 0.0
    %857 = vmatprep.subr.mxu0 0.0
    %858 = vmatpush2.msra.mxu0 0.0
    %859 = vmatprep.subr.mxu0 0.0
    %860 = vmatpush2.msra.mxu0 0.0
    %861 = vmatprep.subr.mxu0 0.0
    %862 = vmatpush2.msra.mxu0 0.0
    %863 = vmatprep.subr.mxu0 0.0
    %864 = vmatpush2.msra.mxu0 0.0
    %865 = vmatprep.subr.mxu0 0.0
    %866 = vmatpush2.msra.mxu0 0.0
    %867 = vmatprep.subr.mxu0 0.0
    %868 = vmatpush2.msra.mxu0 0.0
    %869 = vmatprep.subr.mxu0 0.0
    %870 = vmatpush2.msra.mxu0 0.0
    %871 = vmatprep.mubr.f32.mxu0 0.0
    %872 = vmatmul.mubr.f32.gmra.mxu0 %v805
    %v873 = vpop.f32.mrf.mxu0
    %v874 = vadd.f32 0.0, %v873
    %v875 = vpop.f32.mrf.mxu0
    %v876 = vadd.f32 0.0, %v875
    %877 = vdwg.mxu0
    %878 = vmatprep.subr.mxu0 %v278
    %879 = vmatpush1.msra.mxu0 %v277
    %880 = vmatprep.subr.mxu0 %v274
    %881 = vmatpush1.msra.mxu0 %v273
    %882 = vmatprep.subr.mxu0 %v270
    %883 = vmatpush1.msra.mxu0 %v269
    %884 = vmatprep.subr.mxu0 %v266
    %885 = vmatpush1.msra.mxu0 %v265
    %886 = vmatprep.subr.mxu0 %v262
    %887 = vmatpush1.msra.mxu0 %v261
    %888 = vmatprep.subr.mxu0 %v258
    %889 = vmatpush1.msra.mxu0 %v257
    %890 = vmatprep.subr.mxu0 %v254
    %891 = vmatpush1.msra.mxu0 %v253
    %892 = vmatprep.subr.mxu0 %v250
    %893 = vmatpush1.msra.mxu0 %v249
    %894 = vmatprep.subr.mxu0 %v246
    %895 = vmatpush1.msra.mxu0 %v245
    %896 = vmatprep.subr.mxu0 %v242
    %897 = vmatpush1.msra.mxu0 %v241
    %898 = vmatprep.subr.mxu0 %v238
    %899 = vmatpush1.msra.mxu0 %v237
    %900 = vmatprep.subr.mxu0 %v234
    %901 = vmatpush1.msra.mxu0 %v233
    %902 = vmatprep.subr.mxu0 %v230
    %903 = vmatpush1.msra.mxu0 %v229
    %904 = vmatprep.subr.mxu0 %v226
    %905 = vmatpush1.msra.mxu0 %v225
    %906 = vmatprep.subr.mxu0 %v222
    %907 = vmatpush1.msra.mxu0 %v221
    %908 = vmatprep.subr.mxu0 %v218
    %909 = vmatpush1.msra.mxu0 %v217
    %910 = vmatprep.subr.mxu0 0.0
    %911 = vmatpush2.msra.mxu0 0.0
    %912 = vmatprep.subr.mxu0 0.0
    %913 = vmatpush2.msra.mxu0 0.0
    %914 = vmatprep.subr.mxu0 0.0
    %915 = vmatpush2.msra.mxu0 0.0
    %916 = vmatprep.subr.mxu0 0.0
    %917 = vmatpush2.msra.mxu0 0.0
    %918 = vmatprep.subr.mxu0 0.0
    %919 = vmatpush2.msra.mxu0 0.0
    %920 = vmatprep.subr.mxu0 0.0
    %921 = vmatpush2.msra.mxu0 0.0
    %922 = vmatprep.subr.mxu0 0.0
    %923 = vmatpush2.msra.mxu0 0.0
    %924 = vmatprep.subr.mxu0 0.0
    %925 = vmatpush2.msra.mxu0 0.0
    %926 = vmatprep.subr.mxu0 0.0
    %927 = vmatpush2.msra.mxu0 0.0
    %928 = vmatprep.subr.mxu0 0.0
    %929 = vmatpush2.msra.mxu0 0.0
    %930 = vmatprep.subr.mxu0 0.0
    %931 = vmatpush2.msra.mxu0 0.0
    %932 = vmatprep.subr.mxu0 0.0
    %933 = vmatpush2.msra.mxu0 0.0
    %934 = vmatprep.subr.mxu0 0.0
    %935 = vmatpush2.msra.mxu0 0.0
    %936 = vmatprep.subr.mxu0 0.0
    %937 = vmatpush2.msra.mxu0 0.0
    %938 = vmatprep.subr.mxu0 0.0
    %939 = vmatpush2.msra.mxu0 0.0
    %940 = vmatprep.subr.mxu0 0.0
    %941 = vmatpush2.msra.mxu0 0.0
    %942 = vmatprep.mubr.f32.mxu0 0.0
    %943 = vmatmul.mubr.f32.gmra.mxu0 %v805
    %v944 = vpop.f32.mrf.mxu0
    %v945 = vadd.f32 0.0, %v944
    %v946 = vpop.f32.mrf.mxu0
    %v947 = vadd.f32 0.0, %v946
    %948 = vdwg.mxu0
    %v953 = vrot.slane %v874, 5
    %v954 = vrot.slane %v876, 5
    %v955 = vrot.slane %v945, 5
    %v956 = vrot.slane %v947, 5
    %v961 = vadd.f32 %v140, %v953
    %v962 = vadd.f32 %v142, %v954
    %v963 = vadd.f32 %v211, %v955
    %v964 = vadd.f32 %v213, %v956
    %v965 = vmul.f32 %v961, 0.5
    %v966 = vtanh.pop %v965
    %v967 = vadd.f32 %v966, 1.0
    %v968 = vmul.f32 %v967, 0.5
    %v969 = vmul.f32 %v962, 0.5
    %v970 = vtanh.pop %v969
    %v971 = vadd.f32 %v970, 1.0
    %v972 = vmul.f32 %v971, 0.5
    %v973 = vtanh.pop %v963
    %v974 = vmul.f32 %v964, 0.5
    %v975 = vtanh.pop %v974
    %v976 = vadd.f32 %v975, 1.0
    %v977 = vmul.f32 %v976, 0.5
    %v979 = vrot.slane %v801, 7
    %v981 = vmul.f32 %v972, %v979
    %v982 = vmul.f32 %v968, %v973
    %v983 = vadd.f32 %v981, %v982
    %v984 = vtanh.pop %v983
    %v985 = vmul.f32 %v977, %v984
    %v987 = vrot.slane %v985, 3
    %989 = vmatprep.subr.mxu0 %v276
    %990 = vmatpush1.msra.mxu0 %v275
    %991 = vmatprep.subr.mxu0 %v272
    %992 = vmatpush1.msra.mxu0 %v271
    %993 = vmatprep.subr.mxu0 %v268
    %994 = vmatpush1.msra.mxu0 %v267
    %995 = vmatprep.subr.mxu0 %v264
    %996 = vmatpush1.msra.mxu0 %v263
    %997 = vmatprep.subr.mxu0 %v260
    %998 = vmatpush1.msra.mxu0 %v259
    %999 = vmatprep.subr.mxu0 %v256
    %1000 = vmatpush1.msra.mxu0 %v255
    %1001 = vmatprep.subr.mxu0 %v252
    %1002 = vmatpush1.msra.mxu0 %v251
    %1003 = vmatprep.subr.mxu0 %v248
    %1004 = vmatpush1.msra.mxu0 %v247
    %1005 = vmatprep.subr.mxu0 %v244
    %1006 = vmatpush1.msra.mxu0 %v243
    %1007 = vmatprep.subr.mxu0 %v240
    %1008 = vmatpush1.msra.mxu0 %v239
    %1009 = vmatprep.subr.mxu0 %v236
    %1010 = vmatpush1.msra.mxu0 %v235
    %1011 = vmatprep.subr.mxu0 %v232
    %1012 = vmatpush1.msra.mxu0 %v231
    %1013 = vmatprep.subr.mxu0 %v228
    %1014 = vmatpush1.msra.mxu0 %v227
    %1015 = vmatprep.subr.mxu0 %v224
    %1016 = vmatpush1.msra.mxu0 %v223
    %1017 = vmatprep.subr.mxu0 %v220
    %1018 = vmatpush1.msra.mxu0 %v219
    %1019 = vmatprep.subr.mxu0 %v216
    %1020 = vmatpush1.msra.mxu0 %v215
    %1021 = vmatprep.subr.mxu0 0.0
    %1022 = vmatpush2.msra.mxu0 0.0
    %1023 = vmatprep.subr.mxu0 0.0
    %1024 = vmatpush2.msra.mxu0 0.0
    %1025 = vmatprep.subr.mxu0 0.0
    %1026 = vmatpush2.msra.mxu0 0.0
    %1027 = vmatprep.subr.mxu0 0.0
    %1028 = vmatpush2.msra.mxu0 0.0
    %1029 = vmatprep.subr.mxu0 0.0
    %1030 = vmatpush2.msra.mxu0 0.0
    %1031 = vmatprep.subr.mxu0 0.0
    %1032 = vmatpush2.msra.mxu0 0.0
    %1033 = vmatprep.subr.mxu0 0.0
    %1034 = vmatpush2.msra.mxu0 0.0
    %1035 = vmatprep.subr.mxu0 0.0
    %1036 = vmatpush2.msra.mxu0 0.0
    %1037 = vmatprep.subr.mxu0 0.0
    %1038 = vmatpush2.msra.mxu0 0.0
    %1039 = vmatprep.subr.mxu0 0.0
    %1040 = vmatpush2.msra.mxu0 0.0
    %1041 = vmatprep.subr.mxu0 0.0
    %1042 = vmatpush2.msra.mxu0 0.0
    %1043 = vmatprep.subr.mxu0 0.0
    %1044 = vmatpush2.msra.mxu0 0.0
    %1045 = vmatprep.subr.mxu0 0.0
    %1046 = vmatpush2.msra.mxu0 0.0
    %1047 = vmatprep.subr.mxu0 0.0
    %1048 = vmatpush2.msra.mxu0 0.0
    %1049 = vmatprep.subr.mxu0 0.0
    %1050 = vmatpush2.msra.mxu0 0.0
    %1051 = vmatprep.subr.mxu0 0.0
    %1052 = vmatpush2.msra.mxu0 0.0
    %1053 = vmatprep.mubr.f32.mxu0 0.0
    %1054 = vmatmul.mubr.f32.gmra.mxu0 %v987
    %v1055 = vpop.f32.mrf.mxu0
    %v1056 = vadd.f32 0.0, %v1055
    %v1057 = vpop.f32.mrf.mxu0
    %v1058 = vadd.f32 0.0, %v1057
    %1059 = vdwg.mxu0
    %1060 = vmatprep.subr.mxu0 %v278
    %1061 = vmatpush1.msra.mxu0 %v277
    %1062 = vmatprep.subr.mxu0 %v274
    %1063 = vmatpush1.msra.mxu0 %v273
    %1064 = vmatprep.subr.mxu0 %v270
    %1065 = vmatpush1.msra.mxu0 %v269
    %1066 = vmatprep.subr.mxu0 %v266
    %1067 = vmatpush1.msra.mxu0 %v265
    %1068 = vmatprep.subr.mxu0 %v262
    %1069 = vmatpush1.msra.mxu0 %v261
    %1070 = vmatprep.subr.mxu0 %v258
    %1071 = vmatpush1.msra.mxu0 %v257
    %1072 = vmatprep.subr.mxu0 %v254
    %1073 = vmatpush1.msra.mxu0 %v253
    %1074 = vmatprep.subr.mxu0 %v250
    %1075 = vmatpush1.msra.mxu0 %v249
    %1076 = vmatprep.subr.mxu0 %v246
    %1077 = vmatpush1.msra.mxu0 %v245
    %1078 = vmatprep.subr.mxu0 %v242
    %1079 = vmatpush1.msra.mxu0 %v241
    %1080 = vmatprep.subr.mxu0 %v238
    %1081 = vmatpush1.msra.mxu0 %v237
    %1082 = vmatprep.subr.mxu0 %v234
    %1083 = vmatpush1.msra.mxu0 %v233
    %1084 = vmatprep.subr.mxu0 %v230
    %1085 = vmatpush1.msra.mxu0 %v229
    %1086 = vmatprep.subr.mxu0 %v226
    %1087 = vmatpush1.msra.mxu0 %v225
    %1088 = vmatprep.subr.mxu0 %v222
    %1089 = vmatpush1.msra.mxu0 %v221
    %1090 = vmatprep.subr.mxu0 %v218
    %1091 = vmatpush1.msra.mxu0 %v217
    %1092 = vmatprep.subr.mxu0 0.0
    %1093 = vmatpush2.msra.mxu0 0.0
    %1094 = vmatprep.subr.mxu0 0.0
    %1095 = vmatpush2.msra.mxu0 0.0
    %1096 = vmatprep.subr.mxu0 0.0
    %1097 = vmatpush2.msra.mxu0 0.0
    %1098 = vmatprep.subr.mxu0 0.0
    %1099 = vmatpush2.msra.mxu0 0.0
    %1100 = vmatprep.subr.mxu0 0.0
    %1101 = vmatpush2.msra.mxu0 0.0
    %1102 = vmatprep.subr.mxu0 0.0
    %1103 = vmatpush2.msra.mxu0 0.0
    %1104 = vmatprep.subr.mxu0 0.0
    %1105 = vmatpush2.msra.mxu0 0.0
    %1106 = vmatprep.subr.mxu0 0.0
    %1107 = vmatpush2.msra.mxu0 0.0
    %1108 = vmatprep.subr.mxu0 0.0
    %1109 = vmatpush2.msra.mxu0 0.0
    %1110 = vmatprep.subr.mxu0 0.0
    %1111 = vmatpush2.msra.mxu0 0.0
    %1112 = vmatprep.subr.mxu0 0.0
    %1113 = vmatpush2.msra.mxu0 0.0
    %1114 = vmatprep.subr.mxu0 0.0
    %1115 = vmatpush2.msra.mxu0 0.0
    %1116 = vmatprep.subr.mxu0 0.0
    %1117 = vmatpush2.msra.mxu0 0.0
    %1118 = vmatprep.subr.mxu0 0.0
    %1119 = vmatpush2.msra.mxu0 0.0
    %1120 = vmatprep.subr.mxu0 0.0
    %1121 = vmatpush2.msra.mxu0 0.0
    %1122 = vmatprep.subr.mxu0 0.0
    %1123 = vmatpush2.msra.mxu0 0.0
    %1124 = vmatprep.mubr.f32.mxu0 0.0
    %1125 = vmatmul.mubr.f32.gmra.mxu0 %v987
    %v1126 = vpop.f32.mrf.mxu0
    %v1127 = vadd.f32 0.0, %v1126
    %v1128 = vpop.f32.mrf.mxu0
    %v1129 = vadd.f32 0.0, %v1128
    %1130 = vdwg.mxu0
    %v1135 = vrot.slane %v1056, 4
    %v1136 = vrot.slane %v1058, 4
    %v1137 = vrot.slane %v1127, 4
    %v1138 = vrot.slane %v1129, 4
    %v1143 = vadd.f32 %v140, %v1135
    %v1144 = vadd.f32 %v142, %v1136
    %v1145 = vadd.f32 %v211, %v1137
    %v1146 = vadd.f32 %v213, %v1138
    %v1147 = vmul.f32 %v1143, 0.5
    %v1148 = vtanh.pop %v1147
    %v1149 = vadd.f32 %v1148, 1.0
    %v1150 = vmul.f32 %v1149, 0.5
    %v1151 = vmul.f32 %v1144, 0.5
    %v1152 = vtanh.pop %v1151
    %v1153 = vadd.f32 %v1152, 1.0
    %v1154 = vmul.f32 %v1153, 0.5
    %v1155 = vtanh.pop %v1145
    %v1156 = vmul.f32 %v1146, 0.5
    %v1157 = vtanh.pop %v1156
    %v1158 = vadd.f32 %v1157, 1.0
    %v1159 = vmul.f32 %v1158, 0.5
    %v1161 = vrot.slane %v983, 7
    %v1163 = vmul.f32 %v1154, %v1161
    %v1164 = vmul.f32 %v1150, %v1155
    %v1165 = vadd.f32 %v1163, %v1164
    %v1166 = vtanh.pop %v1165
    %v1167 = vmul.f32 %v1159, %v1166
    %v1169 = vrot.slane %v1167, 4
    %1171 = vmatprep.subr.mxu0 %v276
    %1172 = vmatpush1.msra.mxu0 %v275
    %1173 = vmatprep.subr.mxu0 %v272
    %1174 = vmatpush1.msra.mxu0 %v271
    %1175 = vmatprep.subr.mxu0 %v268
    %1176 = vmatpush1.msra.mxu0 %v267
    %1177 = vmatprep.subr.mxu0 %v264
    %1178 = vmatpush1.msra.mxu0 %v263
    %1179 = vmatprep.subr.mxu0 %v260
    %1180 = vmatpush1.msra.mxu0 %v259
    %1181 = vmatprep.subr.mxu0 %v256
    %1182 = vmatpush1.msra.mxu0 %v255
    %1183 = vmatprep.subr.mxu0 %v252
    %1184 = vmatpush1.msra.mxu0 %v251
    %1185 = vmatprep.subr.mxu0 %v248
    %1186 = vmatpush1.msra.mxu0 %v247
    %1187 = vmatprep.subr.mxu0 %v244
    %1188 = vmatpush1.msra.mxu0 %v243
    %1189 = vmatprep.subr.mxu0 %v240
    %1190 = vmatpush1.msra.mxu0 %v239
    %1191 = vmatprep.subr.mxu0 %v236
    %1192 = vmatpush1.msra.mxu0 %v235
    %1193 = vmatprep.subr.mxu0 %v232
    %1194 = vmatpush1.msra.mxu0 %v231
    %1195 = vmatprep.subr.mxu0 %v228
    %1196 = vmatpush1.msra.mxu0 %v227
    %1197 = vmatprep.subr.mxu0 %v224
    %1198 = vmatpush1.msra.mxu0 %v223
    %1199 = vmatprep.subr.mxu0 %v220
    %1200 = vmatpush1.msra.mxu0 %v219
    %1201 = vmatprep.subr.mxu0 %v216
    %1202 = vmatpush1.msra.mxu0 %v215
    %1203 = vmatprep.subr.mxu0 0.0
    %1204 = vmatpush2.msra.mxu0 0.0
    %1205 = vmatprep.subr.mxu0 0.0
    %1206 = vmatpush2.msra.mxu0 0.0
    %1207 = vmatprep.subr.mxu0 0.0
    %1208 = vmatpush2.msra.mxu0 0.0
    %1209 = vmatprep.subr.mxu0 0.0
    %1210 = vmatpush2.msra.mxu0 0.0
    %1211 = vmatprep.subr.mxu0 0.0
    %1212 = vmatpush2.msra.mxu0 0.0
    %1213 = vmatprep.subr.mxu0 0.0
    %1214 = vmatpush2.msra.mxu0 0.0
    %1215 = vmatprep.subr.mxu0 0.0
    %1216 = vmatpush2.msra.mxu0 0.0
    %1217 = vmatprep.subr.mxu0 0.0
    %1218 = vmatpush2.msra.mxu0 0.0
    %1219 = vmatprep.subr.mxu0 0.0
    %1220 = vmatpush2.msra.mxu0 0.0
    %1221 = vmatprep.subr.mxu0 0.0
    %1222 = vmatpush2.msra.mxu0 0.0
    %1223 = vmatprep.subr.mxu0 0.0
    %1224 = vmatpush2.msra.mxu0 0.0
    %1225 = vmatprep.subr.mxu0 0.0
    %1226 = vmatpush2.msra.mxu0 0.0
    %1227 = vmatprep.subr.mxu0 0.0
    %1228 = vmatpush2.msra.mxu0 0.0
    %1229 = vmatprep.subr.mxu0 0.0
    %1230 = vmatpush2.msra.mxu0 0.0
    %1231 = vmatprep.subr.mxu0 0.0
    %1232 = vmatpush2.msra.mxu0 0.0
    %1233 = vmatprep.subr.mxu0 0.0
    %1234 = vmatpush2.msra.mxu0 0.0
    %1235 = vmatprep.mubr.f32.mxu0 0.0
    %1236 = vmatmul.mubr.f32.gmra.mxu0 %v1169
    %v1237 = vpop.f32.mrf.mxu0
    %v1238 = vadd.f32 0.0, %v1237
    %v1239 = vpop.f32.mrf.mxu0
    %v1240 = vadd.f32 0.0, %v1239
    %1241 = vdwg.mxu0
    %1242 = vmatprep.subr.mxu0 %v278
    %1243 = vmatpush1.msra.mxu0 %v277
    %1244 = vmatprep.subr.mxu0 %v274
    %1245 = vmatpush1.msra.mxu0 %v273
    %1246 = vmatprep.subr.mxu0 %v270
    %1247 = vmatpush1.msra.mxu0 %v269
    %1248 = vmatprep.subr.mxu0 %v266
    %1249 = vmatpush1.msra.mxu0 %v265
    %1250 = vmatprep.subr.mxu0 %v262
    %1251 = vmatpush1.msra.mxu0 %v261
    %1252 = vmatprep.subr.mxu0 %v258
    %1253 = vmatpush1.msra.mxu0 %v257
    %1254 = vmatprep.subr.mxu0 %v254
    %1255 = vmatpush1.msra.mxu0 %v253
    %1256 = vmatprep.subr.mxu0 %v250
    %1257 = vmatpush1.msra.mxu0 %v249
    %1258 = vmatprep.subr.mxu0 %v246
    %1259 = vmatpush1.msra.mxu0 %v245
    %1260 = vmatprep.subr.mxu0 %v242
    %1261 = vmatpush1.msra.mxu0 %v241
    %1262 = vmatprep.subr.mxu0 %v238
    %1263 = vmatpush1.msra.mxu0 %v237
    %1264 = vmatprep.subr.mxu0 %v234
    %1265 = vmatpush1.msra.mxu0 %v233
    %1266 = vmatprep.subr.mxu0 %v230
    %1267 = vmatpush1.msra.mxu0 %v229
    %1268 = vmatprep.subr.mxu0 %v226
    %1269 = vmatpush1.msra.mxu0 %v225
    %1270 = vmatprep.subr.mxu0 %v222
    %1271 = vmatpush1.msra.mxu0 %v221
    %1272 = vmatprep.subr.mxu0 %v218
    %1273 = vmatpush1.msra.mxu0 %v217
    %1274 = vmatprep.subr.mxu0 0.0
    %1275 = vmatpush2.msra.mxu0 0.0
    %1276 = vmatprep.subr.mxu0 0.0
    %1277 = vmatpush2.msra.mxu0 0.0
    %1278 = vmatprep.subr.mxu0 0.0
    %1279 = vmatpush2.msra.mxu0 0.0
    %1280 = vmatprep.subr.mxu0 0.0
    %1281 = vmatpush2.msra.mxu0 0.0
    %1282 = vmatprep.subr.mxu0 0.0
    %1283 = vmatpush2.msra.mxu0 0.0
    %1284 = vmatprep.subr.mxu0 0.0
    %1285 = vmatpush2.msra.mxu0 0.0
    %1286 = vmatprep.subr.mxu0 0.0
    %1287 = vmatpush2.msra.mxu0 0.0
    %1288 = vmatprep.subr.mxu0 0.0
    %1289 = vmatpush2.msra.mxu0 0.0
    %1290 = vmatprep.subr.mxu0 0.0
    %1291 = vmatpush2.msra.mxu0 0.0
    %1292 = vmatprep.subr.mxu0 0.0
    %1293 = vmatpush2.msra.mxu0 0.0
    %1294 = vmatprep.subr.mxu0 0.0
    %1295 = vmatpush2.msra.mxu0 0.0
    %1296 = vmatprep.subr.mxu0 0.0
    %1297 = vmatpush2.msra.mxu0 0.0
    %1298 = vmatprep.subr.mxu0 0.0
    %1299 = vmatpush2.msra.mxu0 0.0
    %1300 = vmatprep.subr.mxu0 0.0
    %1301 = vmatpush2.msra.mxu0 0.0
    %1302 = vmatprep.subr.mxu0 0.0
    %1303 = vmatpush2.msra.mxu0 0.0
    %1304 = vmatprep.subr.mxu0 0.0
    %1305 = vmatpush2.msra.mxu0 0.0
    %1306 = vmatprep.mubr.f32.mxu0 0.0
    %1307 = vmatmul.mubr.f32.gmra.mxu0 %v1169
    %v1308 = vpop.f32.mrf.mxu0
    %v1309 = vadd.f32 0.0, %v1308
    %v1310 = vpop.f32.mrf.mxu0
    %v1311 = vadd.f32 0.0, %v1310
    %1312 = vdwg.mxu0
    %v1317 = vrot.slane %v1238, 3
    %v1318 = vrot.slane %v1240, 3
    %v1319 = vrot.slane %v1309, 3
    %v1320 = vrot.slane %v1311, 3
    %v1325 = vadd.f32 %v140, %v1317
    %v1326 = vadd.f32 %v142, %v1318
    %v1327 = vadd.f32 %v211, %v1319
    %v1328 = vadd.f32 %v213, %v1320
    %v1329 = vmul.f32 %v1325, 0.5
    %v1330 = vtanh.pop %v1329
    %v1331 = vadd.f32 %v1330, 1.0
    %v1332 = vmul.f32 %v1331, 0.5
    %v1333 = vmul.f32 %v1326, 0.5
    %v1334 = vtanh.pop %v1333
    %v1335 = vadd.f32 %v1334, 1.0
    %v1336 = vmul.f32 %v1335, 0.5
    %v1337 = vtanh.pop %v1327
    %v1338 = vmul.f32 %v1328, 0.5
    %v1339 = vtanh.pop %v1338
    %v1340 = vadd.f32 %v1339, 1.0
    %v1341 = vmul.f32 %v1340, 0.5
    %v1343 = vrot.slane %v1165, 7
    %v1345 = vmul.f32 %v1336, %v1343
    %v1346 = vmul.f32 %v1332, %v1337
    %v1347 = vadd.f32 %v1345, %v1346
    %v1348 = vtanh.pop %v1347
    %v1349 = vmul.f32 %v1341, %v1348
    %v1351 = vrot.slane %v1349, 5
    %1353 = vmatprep.subr.mxu0 %v276
    %1354 = vmatpush1.msra.mxu0 %v275
    %1355 = vmatprep.subr.mxu0 %v272
    %1356 = vmatpush1.msra.mxu0 %v271
    %1357 = vmatprep.subr.mxu0 %v268
    %1358 = vmatpush1.msra.mxu0 %v267
    %1359 = vmatprep.subr.mxu0 %v264
    %1360 = vmatpush1.msra.mxu0 %v263
    %1361 = vmatprep.subr.mxu0 %v260
    %1362 = vmatpush1.msra.mxu0 %v259
    %1363 = vmatprep.subr.mxu0 %v256
    %1364 = vmatpush1.msra.mxu0 %v255
    %1365 = vmatprep.subr.mxu0 %v252
    %1366 = vmatpush1.msra.mxu0 %v251
    %1367 = vmatprep.subr.mxu0 %v248
    %1368 = vmatpush1.msra.mxu0 %v247
    %1369 = vmatprep.subr.mxu0 %v244
    %1370 = vmatpush1.msra.mxu0 %v243
    %1371 = vmatprep.subr.mxu0 %v240
    %1372 = vmatpush1.msra.mxu0 %v239
    %1373 = vmatprep.subr.mxu0 %v236
    %1374 = vmatpush1.msra.mxu0 %v235
    %1375 = vmatprep.subr.mxu0 %v232
    %1376 = vmatpush1.msra.mxu0 %v231
    %1377 = vmatprep.subr.mxu0 %v228
    %1378 = vmatpush1.msra.mxu0 %v227
    %1379 = vmatprep.subr.mxu0 %v224
    %1380 = vmatpush1.msra.mxu0 %v223
    %1381 = vmatprep.subr.mxu0 %v220
    %1382 = vmatpush1.msra.mxu0 %v219
    %1383 = vmatprep.subr.mxu0 %v216
    %1384 = vmatpush1.msra.mxu0 %v215
    %1385 = vmatprep.subr.mxu0 0.0
    %1386 = vmatpush2.msra.mxu0 0.0
    %1387 = vmatprep.subr.mxu0 0.0
    %1388 = vmatpush2.msra.mxu0 0.0
    %1389 = vmatprep.subr.mxu0 0.0
    %1390 = vmatpush2.msra.mxu0 0.0
    %1391 = vmatprep.subr.mxu0 0.0
    %1392 = vmatpush2.msra.mxu0 0.0
    %1393 = vmatprep.subr.mxu0 0.0
    %1394 = vmatpush2.msra.mxu0 0.0
    %1395 = vmatprep.subr.mxu0 0.0
    %1396 = vmatpush2.msra.mxu0 0.0
    %1397 = vmatprep.subr.mxu0 0.0
    %1398 = vmatpush2.msra.mxu0 0.0
    %1399 = vmatprep.subr.mxu0 0.0
    %1400 = vmatpush2.msra.mxu0 0.0
    %1401 = vmatprep.subr.mxu0 0.0
    %1402 = vmatpush2.msra.mxu0 0.0
    %1403 = vmatprep.subr.mxu0 0.0
    %1404 = vmatpush2.msra.mxu0 0.0
    %1405 = vmatprep.subr.mxu0 0.0
    %1406 = vmatpush2.msra.mxu0 0.0
    %1407 = vmatprep.subr.mxu0 0.0
    %1408 = vmatpush2.msra.mxu0 0.0
    %1409 = vmatprep.subr.mxu0 0.0
    %1410 = vmatpush2.msra.mxu0 0.0
    %1411 = vmatprep.subr.mxu0 0.0
    %1412 = vmatpush2.msra.mxu0 0.0
    %1413 = vmatprep.subr.mxu0 0.0
    %1414 = vmatpush2.msra.mxu0 0.0
    %1415 = vmatprep.subr.mxu0 0.0
    %1416 = vmatpush2.msra.mxu0 0.0
    %1417 = vmatprep.mubr.f32.mxu0 0.0
    %1418 = vmatmul.mubr.f32.gmra.mxu0 %v1351
    %v1419 = vpop.f32.mrf.mxu0
    %v1420 = vadd.f32 0.0, %v1419
    %v1421 = vpop.f32.mrf.mxu0
    %v1422 = vadd.f32 0.0, %v1421
    %1423 = vdwg.mxu0
    %1424 = vmatprep.subr.mxu0 %v278
    %1425 = vmatpush1.msra.mxu0 %v277
    %1426 = vmatprep.subr.mxu0 %v274
    %1427 = vmatpush1.msra.mxu0 %v273
    %1428 = vmatprep.subr.mxu0 %v270
    %1429 = vmatpush1.msra.mxu0 %v269
    %1430 = vmatprep.subr.mxu0 %v266
    %1431 = vmatpush1.msra.mxu0 %v265
    %1432 = vmatprep.subr.mxu0 %v262
    %1433 = vmatpush1.msra.mxu0 %v261
    %1434 = vmatprep.subr.mxu0 %v258
    %1435 = vmatpush1.msra.mxu0 %v257
    %1436 = vmatprep.subr.mxu0 %v254
    %1437 = vmatpush1.msra.mxu0 %v253
    %1438 = vmatprep.subr.mxu0 %v250
    %1439 = vmatpush1.msra.mxu0 %v249
    %1440 = vmatprep.subr.mxu0 %v246
    %1441 = vmatpush1.msra.mxu0 %v245
    %1442 = vmatprep.subr.mxu0 %v242
    %1443 = vmatpush1.msra.mxu0 %v241
    %1444 = vmatprep.subr.mxu0 %v238
    %1445 = vmatpush1.msra.mxu0 %v237
    %1446 = vmatprep.subr.mxu0 %v234
    %1447 = vmatpush1.msra.mxu0 %v233
    %1448 = vmatprep.subr.mxu0 %v230
    %1449 = vmatpush1.msra.mxu0 %v229
    %1450 = vmatprep.subr.mxu0 %v226
    %1451 = vmatpush1.msra.mxu0 %v225
    %1452 = vmatprep.subr.mxu0 %v222
    %1453 = vmatpush1.msra.mxu0 %v221
    %1454 = vmatprep.subr.mxu0 %v218
    %1455 = vmatpush1.msra.mxu0 %v217
    %1456 = vmatprep.subr.mxu0 0.0
    %1457 = vmatpush2.msra.mxu0 0.0
    %1458 = vmatprep.subr.mxu0 0.0
    %1459 = vmatpush2.msra.mxu0 0.0
    %1460 = vmatprep.subr.mxu0 0.0
    %1461 = vmatpush2.msra.mxu0 0.0
    %1462 = vmatprep.subr.mxu0 0.0
    %1463 = vmatpush2.msra.mxu0 0.0
    %1464 = vmatprep.subr.mxu0 0.0
    %1465 = vmatpush2.msra.mxu0 0.0
    %1466 = vmatprep.subr.mxu0 0.0
    %1467 = vmatpush2.msra.mxu0 0.0
    %1468 = vmatprep.subr.mxu0 0.0
    %1469 = vmatpush2.msra.mxu0 0.0
    %1470 = vmatprep.subr.mxu0 0.0
    %1471 = vmatpush2.msra.mxu0 0.0
    %1472 = vmatprep.subr.mxu0 0.0
    %1473 = vmatpush2.msra.mxu0 0.0
    %1474 = vmatprep.subr.mxu0 0.0
    %1475 = vmatpush2.msra.mxu0 0.0
    %1476 = vmatprep.subr.mxu0 0.0
    %1477 = vmatpush2.msra.mxu0 0.0
    %1478 = vmatprep.subr.mxu0 0.0
    %1479 = vmatpush2.msra.mxu0 0.0
    %1480 = vmatprep.subr.mxu0 0.0
    %1481 = vmatpush2.msra.mxu0 0.0
    %1482 = vmatprep.subr.mxu0 0.0
    %1483 = vmatpush2.msra.mxu0 0.0
    %1484 = vmatprep.subr.mxu0 0.0
    %1485 = vmatpush2.msra.mxu0 0.0
    %1486 = vmatprep.subr.mxu0 0.0
    %1487 = vmatpush2.msra.mxu0 0.0
    %1488 = vmatprep.mubr.f32.mxu0 0.0
    %1489 = vmatmul.mubr.f32.gmra.mxu0 %v1351
    %v1490 = vpop.f32.mrf.mxu0
    %v1491 = vadd.f32 0.0, %v1490
    %v1492 = vpop.f32.mrf.mxu0
    %v1493 = vadd.f32 0.0, %v1492
    %1494 = vdwg.mxu0
    %v1499 = vrot.slane %v1420, 2
    %v1500 = vrot.slane %v1422, 2
    %v1501 = vrot.slane %v1491, 2
    %v1502 = vrot.slane %v1493, 2
    %v1507 = vadd.f32 %v140, %v1499
    %v1508 = vadd.f32 %v142, %v1500
    %v1509 = vadd.f32 %v211, %v1501
    %v1510 = vadd.f32 %v213, %v1502
    %v1511 = vmul.f32 %v1507, 0.5
    %v1512 = vtanh.pop %v1511
    %v1513 = vadd.f32 %v1512, 1.0
    %v1514 = vmul.f32 %v1513, 0.5
    %v1515 = vmul.f32 %v1508, 0.5
    %v1516 = vtanh.pop %v1515
    %v1517 = vadd.f32 %v1516, 1.0
    %v1518 = vmul.f32 %v1517, 0.5
    %v1519 = vtanh.pop %v1509
    %v1520 = vmul.f32 %v1510, 0.5
    %v1521 = vtanh.pop %v1520
    %v1522 = vadd.f32 %v1521, 1.0
    %v1523 = vmul.f32 %v1522, 0.5
    %v1525 = vrot.slane %v1347, 7
    %v1527 = vmul.f32 %v1518, %v1525
    %v1528 = vmul.f32 %v1514, %v1519
    %v1529 = vadd.f32 %v1527, %v1528
    %v1530 = vtanh.pop %v1529
    %v1531 = vmul.f32 %v1523, %v1530
    %v1533 = vrot.slane %v1531, 6
    %1535 = vmatprep.subr.mxu0 %v276
    %1536 = vmatpush1.msra.mxu0 %v275
    %1537 = vmatprep.subr.mxu0 %v272
    %1538 = vmatpush1.msra.mxu0 %v271
    %1539 = vmatprep.subr.mxu0 %v268
    %1540 = vmatpush1.msra.mxu0 %v267
    %1541 = vmatprep.subr.mxu0 %v264
    %1542 = vmatpush1.msra.mxu0 %v263
    %1543 = vmatprep.subr.mxu0 %v260
    %1544 = vmatpush1.msra.mxu0 %v259
    %1545 = vmatprep.subr.mxu0 %v256
    %1546 = vmatpush1.msra.mxu0 %v255
    %1547 = vmatprep.subr.mxu0 %v252
    %1548 = vmatpush1.msra.mxu0 %v251
    %1549 = vmatprep.subr.mxu0 %v248
    %1550 = vmatpush1.msra.mxu0 %v247
    %1551 = vmatprep.subr.mxu0 %v244
    %1552 = vmatpush1.msra.mxu0 %v243
    %1553 = vmatprep.subr.mxu0 %v240
    %1554 = vmatpush1.msra.mxu0 %v239
    %1555 = vmatprep.subr.mxu0 %v236
    %1556 = vmatpush1.msra.mxu0 %v235
    %1557 = vmatprep.subr.mxu0 %v232
    %1558 = vmatpush1.msra.mxu0 %v231
    %1559 = vmatprep.subr.mxu0 %v228
    %1560 = vmatpush1.msra.mxu0 %v227
    %1561 = vmatprep.subr.mxu0 %v224
    %1562 = vmatpush1.msra.mxu0 %v223
    %1563 = vmatprep.subr.mxu0 %v220
    %1564 = vmatpush1.msra.mxu0 %v219
    %1565 = vmatprep.subr.mxu0 %v216
    %1566 = vmatpush1.msra.mxu0 %v215
    %1567 = vmatprep.subr.mxu0 0.0
    %1568 = vmatpush2.msra.mxu0 0.0
    %1569 = vmatprep.subr.mxu0 0.0
    %1570 = vmatpush2.msra.mxu0 0.0
    %1571 = vmatprep.subr.mxu0 0.0
    %1572 = vmatpush2.msra.mxu0 0.0
    %1573 = vmatprep.subr.mxu0 0.0
    %1574 = vmatpush2.msra.mxu0 0.0
    %1575 = vmatprep.subr.mxu0 0.0
    %1576 = vmatpush2.msra.mxu0 0.0
    %1577 = vmatprep.subr.mxu0 0.0
    %1578 = vmatpush2.msra.mxu0 0.0
    %1579 = vmatprep.subr.mxu0 0.0
    %1580 = vmatpush2.msra.mxu0 0.0
    %1581 = vmatprep.subr.mxu0 0.0
    %1582 = vmatpush2.msra.mxu0 0.0
    %1583 = vmatprep.subr.mxu0 0.0
    %1584 = vmatpush2.msra.mxu0 0.0
    %1585 = vmatprep.subr.mxu0 0.0
    %1586 = vmatpush2.msra.mxu0 0.0
    %1587 = vmatprep.subr.mxu0 0.0
    %1588 = vmatpush2.msra.mxu0 0.0
    %1589 = vmatprep.subr.mxu0 0.0
    %1590 = vmatpush2.msra.mxu0 0.0
    %1591 = vmatprep.subr.mxu0 0.0
    %1592 = vmatpush2.msra.mxu0 0.0
    %1593 = vmatprep.subr.mxu0 0.0
    %1594 = vmatpush2.msra.mxu0 0.0
    %1595 = vmatprep.subr.mxu0 0.0
    %1596 = vmatpush2.msra.mxu0 0.0
    %1597 = vmatprep.subr.mxu0 0.0
    %1598 = vmatpush2.msra.mxu0 0.0
    %1599 = vmatprep.mubr.f32.mxu0 0.0
    %1600 = vmatmul.mubr.f32.gmra.mxu0 %v1533
    %v1601 = vpop.f32.mrf.mxu0
    %v1602 = vadd.f32 0.0, %v1601
    %v1603 = vpop.f32.mrf.mxu0
    %v1604 = vadd.f32 0.0, %v1603
    %1605 = vdwg.mxu0
    %1606 = vmatprep.subr.mxu0 %v278
    %1607 = vmatpush1.msra.mxu0 %v277
    %1608 = vmatprep.subr.mxu0 %v274
    %1609 = vmatpush1.msra.mxu0 %v273
    %1610 = vmatprep.subr.mxu0 %v270
    %1611 = vmatpush1.msra.mxu0 %v269
    %1612 = vmatprep.subr.mxu0 %v266
    %1613 = vmatpush1.msra.mxu0 %v265
    %1614 = vmatprep.subr.mxu0 %v262
    %1615 = vmatpush1.msra.mxu0 %v261
    %1616 = vmatprep.subr.mxu0 %v258
    %1617 = vmatpush1.msra.mxu0 %v257
    %1618 = vmatprep.subr.mxu0 %v254
    %1619 = vmatpush1.msra.mxu0 %v253
    %1620 = vmatprep.subr.mxu0 %v250
    %1621 = vmatpush1.msra.mxu0 %v249
    %1622 = vmatprep.subr.mxu0 %v246
    %1623 = vmatpush1.msra.mxu0 %v245
    %1624 = vmatprep.subr.mxu0 %v242
    %1625 = vmatpush1.msra.mxu0 %v241
    %1626 = vmatprep.subr.mxu0 %v238
    %1627 = vmatpush1.msra.mxu0 %v237
    %1628 = vmatprep.subr.mxu0 %v234
    %1629 = vmatpush1.msra.mxu0 %v233
    %1630 = vmatprep.subr.mxu0 %v230
    %1631 = vmatpush1.msra.mxu0 %v229
    %1632 = vmatprep.subr.mxu0 %v226
    %1633 = vmatpush1.msra.mxu0 %v225
    %1634 = vmatprep.subr.mxu0 %v222
    %1635 = vmatpush1.msra.mxu0 %v221
    %1636 = vmatprep.subr.mxu0 %v218
    %1637 = vmatpush1.msra.mxu0 %v217
    %1638 = vmatprep.subr.mxu0 0.0
    %1639 = vmatpush2.msra.mxu0 0.0
    %1640 = vmatprep.subr.mxu0 0.0
    %1641 = vmatpush2.msra.mxu0 0.0
    %1642 = vmatprep.subr.mxu0 0.0
    %1643 = vmatpush2.msra.mxu0 0.0
    %1644 = vmatprep.subr.mxu0 0.0
    %1645 = vmatpush2.msra.mxu0 0.0
    %1646 = vmatprep.subr.mxu0 0.0
    %1647 = vmatpush2.msra.mxu0 0.0
    %1648 = vmatprep.subr.mxu0 0.0
    %1649 = vmatpush2.msra.mxu0 0.0
    %1650 = vmatprep.subr.mxu0 0.0
    %1651 = vmatpush2.msra.mxu0 0.0
    %1652 = vmatprep.subr.mxu0 0.0
    %1653 = vmatpush2.msra.mxu0 0.0
    %1654 = vmatprep.subr.mxu0 0.0
    %1655 = vmatpush2.msra.mxu0 0.0
    %1656 = vmatprep.subr.mxu0 0.0
    %1657 = vmatpush2.msra.mxu0 0.0
    %1658 = vmatprep.subr.mxu0 0.0
    %1659 = vmatpush2.msra.mxu0 0.0
    %1660 = vmatprep.subr.mxu0 0.0
    %1661 = vmatpush2.msra.mxu0 0.0
    %1662 = vmatprep.subr.mxu0 0.0
    %1663 = vmatpush2.msra.mxu0 0.0
    %1664 = vmatprep.subr.mxu0 0.0
    %1665 = vmatpush2.msra.mxu0 0.0
    %1666 = vmatprep.subr.mxu0 0.0
    %1667 = vmatpush2.msra.mxu0 0.0
    %1668 = vmatprep.subr.mxu0 0.0
    %1669 = vmatpush2.msra.mxu0 0.0
    %1670 = vmatprep.mubr.f32.mxu0 0.0
    %1671 = vmatmul.mubr.f32.gmra.mxu0 %v1533
    %v1672 = vpop.f32.mrf.mxu0
    %v1673 = vadd.f32 0.0, %v1672
    %v1674 = vpop.f32.mrf.mxu0
    %v1675 = vadd.f32 0.0, %v1674
    %1676 = vdwg.mxu0
    %v1681 = vrot.slane %v1602, 1
    %v1682 = vrot.slane %v1604, 1
    %v1683 = vrot.slane %v1673, 1
    %v1684 = vrot.slane %v1675, 1
    %v1689 = vadd.f32 %v140, %v1681
    %v1690 = vadd.f32 %v142, %v1682
    %v1691 = vadd.f32 %v211, %v1683
    %v1692 = vadd.f32 %v213, %v1684
    %v1693 = vmul.f32 %v1689, 0.5
    %v1694 = vtanh.pop %v1693
    %v1695 = vadd.f32 %v1694, 1.0
    %v1696 = vmul.f32 %v1695, 0.5
    %v1697 = vmul.f32 %v1690, 0.5
    %v1698 = vtanh.pop %v1697
    %v1699 = vadd.f32 %v1698, 1.0
    %v1700 = vmul.f32 %v1699, 0.5
    %v1701 = vtanh.pop %v1691
    %v1702 = vmul.f32 %v1692, 0.5
    %v1703 = vtanh.pop %v1702
    %v1704 = vadd.f32 %v1703, 1.0
    %v1705 = vmul.f32 %v1704, 0.5
    %v1707 = vrot.slane %v1529, 7
    %v1709 = vmul.f32 %v1700, %v1707
    %v1710 = vmul.f32 %v1696, %v1701
    %v1711 = vadd.f32 %v1709, %v1710
    %v1712 = vtanh.pop %v1711
    %v1713 = vmul.f32 %v1705, %v1712
    %v1714 = vld [vmem:[%s4] sm:$0xff]
    %v1715 = vld [vmem:[%s4 + $0x8] sm:$0xff]
    %v1716 = vld [vmem:[%s4 + $0x10] sm:$0xff]
    %v1717 = vld [vmem:[%s4 + $0x18] sm:$0xff]
    %v1718 = vld [vmem:[%s4 + $0x20] sm:$0xff]
    %v1719 = vld [vmem:[%s4 + $0x28] sm:$0xff]
    %v1720 = vld [vmem:[%s4 + $0x30] sm:$0xff]
    %v1721 = vld [vmem:[%s4 + $0x38] sm:$0xff]
    %v1722 = vld [vmem:[%s4 + $0x40] sm:$0xff]
    %v1723 = vld [vmem:[%s4 + $0x48] sm:$0xff]
    %v1724 = vld [vmem:[%s4 + $0x50] sm:$0xff]
    %v1725 = vld [vmem:[%s4 + $0x58] sm:$0xff]
    %v1726 = vld [vmem:[%s4 + $0x60] sm:$0xff]
    %v1727 = vld [vmem:[%s4 + $0x68] sm:$0xff]
    %v1728 = vld [vmem:[%s4 + $0x70] sm:$0xff]
    %v1729 = vld [vmem:[%s4 + $0x78] sm:$0xff]
    %v1730 = vld [vmem:[%s5] sm:$0x1]
    %v1732 = vrot.slane %v1713, 7
    %1734 = vmatprep.subr.mxu0 0.0
    %1735 = vmatpush1.msra.mxu0 %v1729
    %1736 = vmatprep.subr.mxu0 0.0
    %1737 = vmatpush1.msra.mxu0 %v1728
    %1738 = vmatprep.subr.mxu0 0.0
    %1739 = vmatpush1.msra.mxu0 %v1727
    %1740 = vmatprep.subr.mxu0 0.0
    %1741 = vmatpush1.msra.mxu0 %v1726
    %1742 = vmatprep.subr.mxu0 0.0
    %1743 = vmatpush1.msra.mxu0 %v1725
    %1744 = vmatprep.subr.mxu0 0.0
    %1745 = vmatpush1.msra.mxu0 %v1724
    %1746 = vmatprep.subr.mxu0 0.0
    %1747 = vmatpush1.msra.mxu0 %v1723
    %1748 = vmatprep.subr.mxu0 0.0
    %1749 = vmatpush1.msra.mxu0 %v1722
    %1750 = vmatprep.subr.mxu0 0.0
    %1751 = vmatpush1.msra.mxu0 %v1721
    %1752 = vmatprep.subr.mxu0 0.0
    %1753 = vmatpush1.msra.mxu0 %v1720
    %1754 = vmatprep.subr.mxu0 0.0
    %1755 = vmatpush1.msra.mxu0 %v1719
    %1756 = vmatprep.subr.mxu0 0.0
    %1757 = vmatpush1.msra.mxu0 %v1718
    %1758 = vmatprep.subr.mxu0 0.0
    %1759 = vmatpush1.msra.mxu0 %v1717
    %1760 = vmatprep.subr.mxu0 0.0
    %1761 = vmatpush1.msra.mxu0 %v1716
    %1762 = vmatprep.subr.mxu0 0.0
    %1763 = vmatpush1.msra.mxu0 %v1715
    %1764 = vmatprep.subr.mxu0 0.0
    %1765 = vmatpush1.msra.mxu0 %v1714
    %1766 = vmatprep.subr.mxu0 0.0
    %1767 = vmatpush2.msra.mxu0 0.0
    %1768 = vmatprep.subr.mxu0 0.0
    %1769 = vmatpush2.msra.mxu0 0.0
    %1770 = vmatprep.subr.mxu0 0.0
    %1771 = vmatpush2.msra.mxu0 0.0
    %1772 = vmatprep.subr.mxu0 0.0
    %1773 = vmatpush2.msra.mxu0 0.0
    %1774 = vmatprep.subr.mxu0 0.0
    %1775 = vmatpush2.msra.mxu0 0.0
    %1776 = vmatprep.subr.mxu0 0.0
    %1777 = vmatpush2.msra.mxu0 0.0
    %1778 = vmatprep.subr.mxu0 0.0
    %1779 = vmatpush2.msra.mxu0 0.0
    %1780 = vmatprep.subr.mxu0 0.0
    %1781 = vmatpush2.msra.mxu0 0.0
    %1782 = vmatprep.subr.mxu0 0.0
    %1783 = vmatpush2.msra.mxu0 0.0
    %1784 = vmatprep.subr.mxu0 0.0
    %1785 = vmatpush2.msra.mxu0 0.0
    %1786 = vmatprep.subr.mxu0 0.0
    %1787 = vmatpush2.msra.mxu0 0.0
    %1788 = vmatprep.subr.mxu0 0.0
    %1789 = vmatpush2.msra.mxu0 0.0
    %1790 = vmatprep.subr.mxu0 0.0
    %1791 = vmatpush2.msra.mxu0 0.0
    %1792 = vmatprep.subr.mxu0 0.0
    %1793 = vmatpush2.msra.mxu0 0.0
    %1794 = vmatprep.subr.mxu0 0.0
    %1795 = vmatpush2.msra.mxu0 0.0
    %1796 = vmatprep.subr.mxu0 0.0
    %1797 = vmatpush2.msra.mxu0 0.0
    %1798 = vmatprep.mubr.f32.mxu0 0.0
    %1799 = vmatmul.mubr.f32.gmra.mxu0 %v1732
    %v1800 = vpop.f32.mrf.mxu0
    %v1801 = vadd.f32 %v1730, %v1800
    %v1802 = vpop.f32.mrf.mxu0
    %1803 = vdwg.mxu0
    %v1804 = vmul.f32 %v1801, 0.5
    %v1805 = vtanh.pop %v1804
    %v1806 = vadd.f32 %v1805, 1.0
    %v1807 = vmul.f32 %v1806, 0.5
    %vm1808 = vcmask 57344
    %1809 = vst.msk [vmem:[#allocation5] sm:$0x1] %vm1808, %v1807
    // Predicated region
    $region30: #{tpu_custom_call.1} parent=1 // pred_check
      _
    $region31: #{tpu_custom_call.1} parent=1 // pred_check_branch
      %1811 = sbr.rel (0) target = $region33
    $region32: #{tpu_custom_call.1} parent=1 // pred_region
      %s1813 = ssub.s32 16, 16
      %1814 = vsyncadd [#allocation4], %s1813
      %s1816 = sshll.u32 [#allocation5], 4
      %s1817 = int_to_ptr.vmem [resolvable:$true] %s1816
      %1819 = dma.vmem_to_hbm [thread:$0]  %s1817, 16, %s6, [#allocation4]
    $region33: #{tpu_custom_call.1} parent=1 // pred_fallthru
      _
    // Predicated region
    $region34: #{tpu_custom_call.1} parent=1 // pred_check
      _
    $region35: #{tpu_custom_call.1} parent=1 // pred_check_branch
      %1821 = sbr.rel (0) target = $region37
    $region36: #{tpu_custom_call.1} parent=1 // pred_region
      %1822 = dma.done [#allocation4], 16
    $region37: #{tpu_custom_call.1} parent=1 // pred_fallthru
      _
    %1823 = vsyncpa [#allocation3], 1
    %1824 = vsyncpa [#allocation4], 1

</llo_original>
